<compile_context>
chip_gen: v5e
topology: v5e:2x2
jax: 0.10.0
libtpu: 0.0.40
codegen_flags: <defaults>
</compile_context>

<pallas_src>
import functools
import math

import jax
import jax.numpy as jnp
from jax.experimental import pallas as pl
from jax.experimental.pallas import tpu as pltpu

LN_EPS = 1e-12

# Per-generation VMEM cap: ~75% of physical (128 MiB on v5e/v6e, 64 MiB on v7x),
# capped at 100 MB. Conservative fallback if the query is unavailable.
try:
    _VMEM_LIMIT = int(min(pltpu.get_tpu_info().vmem_capacity_bytes * 3 // 4,
                          100 * 1024 * 1024))
except Exception:  # pragma: no cover - CPU interpret / older runtimes
    _VMEM_LIMIT = 48 * 1024 * 1024


def _pick_tile(n, target, multiple):
    """Largest divisor of n that is <= target and a multiple of `multiple`.
    Falls back to the full extent n (always a legal block size)."""
    if n <= target:
        return n
    t = (target // multiple) * multiple
    while t >= multiple:
        if n % t == 0:
            return t
        t -= multiple
    return n


def _resident_spec(block_shape, index_map):
    """BlockSpec for a block whose index never changes (weights / biases):
    single-buffered so the default second pipeline buffer doesn't waste VMEM."""
    try:
        return pl.BlockSpec(block_shape, index_map, pipeline_mode=pl.Buffered(1))
    except TypeError:  # older jax without pipeline_mode kwarg
        return pl.BlockSpec(block_shape, index_map)


# --------------------------- in-kernel math helpers ------------------------- #

def _ln(y, g, b):
    mu = jnp.mean(y, axis=-1, keepdims=True)
    var = jnp.mean((y - mu) ** 2, axis=-1, keepdims=True)
    return (y - mu) * jax.lax.rsqrt(var + LN_EPS) * g + b


def _erf(x):
    # Abramowitz & Stegun 7.1.26, max abs error ~1.5e-7 (~f32 precision).
    p = 0.3275911
    a1, a2, a3, a4, a5 = (0.254829592, -0.284496736, 1.421413741,
                          -1.453152027, 1.061405429)
    ax = jnp.abs(x)
    t = 1.0 / (1.0 + p * ax)
    poly = ((((a5 * t + a4) * t + a3) * t + a2) * t + a1) * t
    r = 1.0 - poly * jnp.exp(-ax * ax)
    return jnp.where(x >= 0, r, -r)


def _gelu_exact(x):
    # Exact (erf-based) GELU, matching PyTorch's default nn.GELU.
    return 0.5 * x * (1.0 + _erf(x * 0.7071067811865476))


# ----------------------------- Pallas kernels ------------------------------ #

def _ln_kernel(x_ref, g_ref, b_ref, o_ref):
    x = x_ref[...].astype(jnp.float32)
    o_ref[...] = _ln(x, g_ref[...], b_ref[...]).astype(o_ref.dtype)


def layernorm(x2d, gamma, beta, *, row_tile=512):
    M, H = x2d.shape
    tm = _pick_tile(M, row_tile, 8)
    return pl.pallas_call(
        _ln_kernel,
        out_shape=jax.ShapeDtypeStruct((M, H), x2d.dtype),
        grid=(M // tm,),
        in_specs=[
            pl.BlockSpec((tm, H), lambda i: (i, 0)),
            _resident_spec((1, H), lambda i: (0, 0)),
            _resident_spec((1, H), lambda i: (0, 0)),
        ],
        out_specs=pl.BlockSpec((tm, H), lambda i: (i, 0)),
        compiler_params=pltpu.CompilerParams(
            dimension_semantics=("parallel",)),
    )(x2d, gamma.reshape(1, H), beta.reshape(1, H))


def _qkv_kernel(x_ref, w_ref, b_ref, q_ref, k_ref, v_ref):
    # One activation read; one (tm,H)@(H,3H) matmul (single MXU fill/drain);
    # weights arrive already in bf16 and stay resident in VMEM.
    x = x_ref[...].astype(jnp.bfloat16)
    y = jnp.dot(x, w_ref[...], preferred_element_type=jnp.float32) + b_ref[...]
    H = q_ref.shape[-1]
    q_ref[...] = y[:, 0 * H:1 * H].astype(q_ref.dtype)
    k_ref[...] = y[:, 1 * H:2 * H].astype(k_ref.dtype)
    v_ref[...] = y[:, 2 * H:3 * H].astype(v_ref.dtype)


def qkv_projection(x2d, w_qkv, b_qkv, *, row_tile=512):
    M, H = x2d.shape
    tm = _pick_tile(M, row_tile, 8)
    out = jax.ShapeDtypeStruct((M, H), x2d.dtype)
    return pl.pallas_call(
        _qkv_kernel,
        out_shape=(out, out, out),
        grid=(M // tm,),
        in_specs=[
            pl.BlockSpec((tm, H), lambda i: (i, 0)),
            _resident_spec((H, 3 * H), lambda i: (0, 0)),     # resident bf16 weight
            _resident_spec((1, 3 * H), lambda i: (0, 0)),
        ],
        out_specs=(pl.BlockSpec((tm, H), lambda i: (i, 0)),) * 3,
        compiler_params=pltpu.CompilerParams(
            dimension_semantics=("parallel",),
            vmem_limit_bytes=_VMEM_LIMIT),
    )(x2d, w_qkv, b_qkv.reshape(1, 3 * H))


def _mha_kernel(q_ref, k_ref, v_ref, mask_ref, o_ref, ctx_sc,
                *, n_heads, head_dim, scale):
    # K/V hold the full sequence for this batch element (DMA'd once per b),
    # so the softmax over keys is exact per q-tile (no online statistics needed).
    # TODO(synk): switch to an online-softmax kv-tile loop for very long S.
    tq = q_ref.shape[1]
    S = k_ref.shape[1]

    # Pre-scale Q once (tq*Dh multiplies per head instead of tq*S on the scores).
    q = (q_ref[0] * scale).astype(jnp.bfloat16)          # (tq, H)
    k = k_ref[0].astype(jnp.bfloat16)                    # (S, H)
    v = v_ref[0].astype(jnp.bfloat16)                    # (S, H)
    # Hoist the additive-mask broadcast out of the head loop (no per-head re-emit).
    mask = jnp.broadcast_to(mask_ref[0], (tq, S))        # (tq, S)

    for h in range(n_heads):                             # static unroll over heads
        lo, hi = h * head_dim, (h + 1) * head_dim
        qh = q[:, lo:hi]                                 # (tq, Dh)
        kh = k[:, lo:hi]                                 # (S, Dh)
        vh = v[:, lo:hi]                                 # (S, Dh)

        s = jax.lax.dot_general(qh, kh, (((1,), (1,)), ((), ())),
                                preferred_element_type=jnp.float32)
        s = s + mask                                     # (tq, S)

        m = jnp.max(s, axis=-1, keepdims=True)
        p = jnp.exp(s - m)
        l = jnp.sum(p, axis=-1, keepdims=True)
        ctx = jnp.dot(p.astype(jnp.bfloat16), vh,
                      preferred_element_type=jnp.float32)
        ctx_sc[:, lo:hi] = ctx * (1.0 / l)

    # ONE lane-dense (tq, H) store (no per-head masked partial stores).
    o_ref[0] = ctx_sc[...].astype(o_ref.dtype)


def mha_attention(q, k, v, mask_add, n_heads, *, q_tile=256):
    B, S, H = q.shape
    Dh = H // n_heads
    scale = 1.0 / math.sqrt(Dh)
    tq = _pick_tile(S, q_tile, 8)
    kernel = functools.partial(_mha_kernel, n_heads=n_heads, head_dim=Dh,
                               scale=scale)
    return pl.pallas_call(
        kernel,
        out_shape=jax.ShapeDtypeStruct((B, S, H), q.dtype),
        grid=(B, S // tq),
        in_specs=[
            pl.BlockSpec((1, tq, H), lambda b, qi: (b, qi, 0)),
            pl.BlockSpec((1, S, H), lambda b, qi: (b, 0, 0)),   # K: once per batch elem
            pl.BlockSpec((1, S, H), lambda b, qi: (b, 0, 0)),   # V: once per batch elem
            pl.BlockSpec((1, 1, S), lambda b, qi: (b, 0, 0)),
        ],
        out_specs=pl.BlockSpec((1, tq, H), lambda b, qi: (b, qi, 0)),
        scratch_shapes=[pltpu.VMEM((tq, H), jnp.float32)],      # lane-dense ctx slab
        compiler_params=pltpu.CompilerParams(
            dimension_semantics=("parallel", "parallel"),
            vmem_limit_bytes=_VMEM_LIMIT),
    )(q, k, v, mask_add)


def _proj_add_ln_kernel(x_ref, r_ref, w_ref, b_ref, g_ref, bb_ref, o_ref):
    # attention-output projection + residual add + LayerNorm, fused.
    y = jnp.dot(x_ref[...].astype(jnp.bfloat16), w_ref[...],
                preferred_element_type=jnp.float32)
    y = y + b_ref[...] + r_ref[...].astype(jnp.float32)
    o_ref[...] = _ln(y, g_ref[...], bb_ref[...]).astype(o_ref.dtype)


def proj_add_layernorm(x2d, resid2d, w, b, gamma, beta, *, row_tile=512):
    M, K = x2d.shape
    N = w.shape[1]
    tm = _pick_tile(M, row_tile, 8)
    return pl.pallas_call(
        _proj_add_ln_kernel,
        out_shape=jax.ShapeDtypeStruct((M, N), x2d.dtype),
        grid=(M // tm,),
        in_specs=[
            pl.BlockSpec((tm, K), lambda i: (i, 0)),
            pl.BlockSpec((tm, N), lambda i: (i, 0)),
            _resident_spec((K, N), lambda i: (0, 0)),          # resident bf16 weight
            _resident_spec((1, N), lambda i: (0, 0)),
            _resident_spec((1, N), lambda i: (0, 0)),
            _resident_spec((1, N), lambda i: (0, 0)),
        ],
        out_specs=pl.BlockSpec((tm, N), lambda i: (i, 0)),
        compiler_params=pltpu.CompilerParams(
            dimension_semantics=("parallel",),
            vmem_limit_bytes=_VMEM_LIMIT),
    )(x2d, resid2d, w, b.reshape(1, N), gamma.reshape(1, N), beta.reshape(1, N))


def _ffn_add_ln_kernel(x_ref, w1_ref, b1_ref, w2_ref, b2_ref, g_ref, bb_ref, o_ref):
    # Linear -> exact GELU -> Linear -> residual add -> LayerNorm, fused.
    # TODO(synk): tile over d_ff (F) with an inner accumulate loop for BERT-large
    # on v7x if the bf16 + single-buffered weights ever exceed the VMEM budget.
    x = x_ref[...].astype(jnp.float32)
    h = jnp.dot(x.astype(jnp.bfloat16), w1_ref[...],
                preferred_element_type=jnp.float32) + b1_ref[...]
    h = _gelu_exact(h)
    y = jnp.dot(h.astype(jnp.bfloat16), w2_ref[...],
                preferred_element_type=jnp.float32) + b2_ref[...]
    y = y + x                                   # residual kept in f32
    o_ref[...] = _ln(y, g_ref[...], bb_ref[...]).astype(o_ref.dtype)


def ffn_add_layernorm(x2d, w1, b1, w2, b2, gamma, beta, *, row_tile=256):
    M, H = x2d.shape
    F = w1.shape[1]
    tm = _pick_tile(M, row_tile, 8)
    return pl.pallas_call(
        _ffn_add_ln_kernel,
        out_shape=jax.ShapeDtypeStruct((M, H), x2d.dtype),
        grid=(M // tm,),
        in_specs=[
            pl.BlockSpec((tm, H), lambda i: (i, 0)),
            _resident_spec((H, F), lambda i: (0, 0)),          # resident bf16 weight
            _resident_spec((1, F), lambda i: (0, 0)),
            _resident_spec((F, H), lambda i: (0, 0)),          # resident bf16 weight
            _resident_spec((1, H), lambda i: (0, 0)),
            _resident_spec((1, H), lambda i: (0, 0)),
            _resident_spec((1, H), lambda i: (0, 0)),
        ],
        out_specs=pl.BlockSpec((tm, H), lambda i: (i, 0)),
        compiler_params=pltpu.CompilerParams(
            dimension_semantics=("parallel",),
            vmem_limit_bytes=_VMEM_LIMIT),
    )(x2d, w1, b1.reshape(1, F), w2, b2.reshape(1, H),
      gamma.reshape(1, H), beta.reshape(1, H))


# ------------------------- parameters & forward ---------------------------- #

def init_params(key, hidden, vocab, d_ff, n_layers, max_pos, type_vocab, pad_idx):
    keys = iter(jax.random.split(key, 3 + 4 * n_layers + 1))
    std = 0.02

    def dense(shape):
        return jax.random.normal(next(keys), shape, jnp.float32) * std

    p = {}
    word = dense((vocab, hidden))
    p['word_emb'] = word.at[pad_idx].set(0.0)          # padding_idx => zero row
    p['pos_emb'] = dense((max_pos, hidden))
    p['type_emb'] = dense((type_vocab, hidden))
    p['emb_ln_g'] = jnp.ones((hidden,), jnp.float32)
    p['emb_ln_b'] = jnp.zeros((hidden,), jnp.float32)

    layers = []
    for _ in range(n_layers):
        layers.append({
            # Matmul weights are stored in bf16 once; kernels never re-cast them.
            'w_qkv': dense((hidden, 3 * hidden)).astype(jnp.bfloat16),
            'b_qkv': jnp.zeros((3 * hidden,), jnp.float32),
            'wo': dense((hidden, hidden)).astype(jnp.bfloat16),
            'bo': jnp.zeros((hidden,), jnp.float32),
            'attn_ln_g': jnp.ones((hidden,), jnp.float32),
            'attn_ln_b': jnp.zeros((hidden,), jnp.float32),
            'w1': dense((hidden, d_ff)).astype(jnp.bfloat16),
            'b1': jnp.zeros((d_ff,), jnp.float32),
            'w2': dense((d_ff, hidden)).astype(jnp.bfloat16),
            'b2': jnp.zeros((hidden,), jnp.float32),
            'ffn_ln_g': jnp.ones((hidden,), jnp.float32),
            'ffn_ln_b': jnp.zeros((hidden,), jnp.float32),
        })
    p['layers'] = layers
    p['pool_w'] = dense((hidden, hidden))
    p['pool_b'] = jnp.zeros((hidden,), jnp.float32)
    return p


def bert_forward(params, input_ids, attention_mask, token_type_ids, n_heads):
    B, S = input_ids.shape
    H = params['word_emb'].shape[1]
    M = B * S

    # --- BertEmbedding: word + position + token_type (plain JAX gathers), LN in Pallas ---
    we = jnp.take(params['word_emb'], input_ids, axis=0)              # (B,S,H)
    pe = params['pos_emb'][:S][None, :, :]                            # (1,S,H)
    te = jnp.take(params['type_emb'], token_type_ids, axis=0)         # (B,S,H)
    h = layernorm((we + pe + te).reshape(M, H),
                  params['emb_ln_g'], params['emb_ln_b'])
    # TODO(synk): dropout (p=0.1) is identity here (inference-mode forward).

    # additive attention mask shared by all heads: 0 where attended, -1e4 where masked
    mask_add = ((1.0 - attention_mask.astype(jnp.float32)) * -10000.0)[:, None, :]

    # --- BertEncoder ---
    for lp in params['layers']:
        q2d, k2d, v2d = qkv_projection(h, lp['w_qkv'], lp['b_qkv'])   # 3 x (M,H)
        q = q2d.reshape(B, S, H)
        k = k2d.reshape(B, S, H)
        v = v2d.reshape(B, S, H)

        ctx = mha_attention(q, k, v, mask_add, n_heads)               # (B,S,H)

        h = proj_add_layernorm(ctx.reshape(M, H), h, lp['wo'], lp['bo'],
                               lp['attn_ln_g'], lp['attn_ln_b'])
        h = ffn_add_layernorm(h, lp['w1'], lp['b1'], lp['w2'], lp['b2'],
                              lp['ffn_ln_g'], lp['ffn_ln_b'])

    seq_out = h.reshape(B, S, H)

    # --- BertPooler: tiny (B,H) linear + tanh on [CLS]; plain JAX per perf review ---
    pooled_out = jnp.tanh(seq_out[:, 0, :] @ params['pool_w'] + params['pool_b'])
    return seq_out, pooled_out


# ----------------------------------- main ----------------------------------- #

if __name__ == "__main__":
    hidden_size, vocab_size, d_ff = 32, 100, 64
    n_layers, n_heads = 2, 2
    max_position_embeddings, type_vocab_size, pad_idx = 512, 2, 0
    B, S = 2, 8

    key = jax.random.PRNGKey(0)
    pkey, ikey = jax.random.split(key)

    params = init_params(pkey, hidden_size, vocab_size, d_ff, n_layers,
                         max_position_embeddings, type_vocab_size, pad_idx)

    input_ids = jax.random.randint(ikey, (B, S), 1, vocab_size, dtype=jnp.int32)
    attention_mask = jnp.ones((B, S), jnp.int32).at[1, 6:].set(0)
    input_ids = jnp.where(attention_mask == 1, input_ids, pad_idx).astype(jnp.int32)
    token_type_ids = jnp.concatenate(
        [jnp.zeros((B, S // 2), jnp.int32), jnp.ones((B, S // 2), jnp.int32)], axis=1)

    fwd = jax.jit(functools.partial(bert_forward, n_heads=n_heads))
    seq_out, pooled_out = fwd(params, input_ids, attention_mask, token_type_ids)
    jax.block_until_ready((seq_out, pooled_out))

    assert seq_out.shape == (B, S, hidden_size)
    assert pooled_out.shape == (B, hidden_size)
    assert jnp.all(jnp.isfinite(seq_out)) and jnp.all(jnp.isfinite(pooled_out))
    print("KERNEL_OK")
</pallas_src>

<mosaic_0001>
module attributes {stable_mosaic.version = 11 : i64} {
  func.func @_qkv_kernel(%arg0: i32, %arg1: memref<16x32xf32, #tpu.memory_space<vmem>>, %arg2: memref<32x96xbf16, #tpu.memory_space<vmem>>, %arg3: memref<1x96xf32, #tpu.memory_space<vmem>>, %arg4: memref<16x32xf32, #tpu.memory_space<vmem>>, %arg5: memref<16x32xf32, #tpu.memory_space<vmem>>, %arg6: memref<16x32xf32, #tpu.memory_space<vmem>>) attributes {dimension_semantics = [#tpu.dimension_semantics<parallel>], iteration_bounds = array<i64: 1>, scalar_prefetch = 0 : i64, scratch_operands = 0 : i64, tpu.core_type = #tpu.core_type<tc>, window_params = [{transform_indices = @transform_0, window_bounds = array<i64: 16, 32>}, {pipeline_mode = #tpu.pipeline_mode<synchronous>, transform_indices = @transform_1, window_bounds = array<i64: 32, 96>}, {pipeline_mode = #tpu.pipeline_mode<synchronous>, transform_indices = @transform_2, window_bounds = array<i64: 1, 96>}, {transform_indices = @transform_3, window_bounds = array<i64: 16, 32>}, {transform_indices = @transform_4, window_bounds = array<i64: 16, 32>}, {transform_indices = @transform_5, window_bounds = array<i64: 16, 32>}]} {
    %c0 = arith.constant 0 : index
    %c0_0 = arith.constant 0 : index
    %0 = vector.load %arg1[%c0, %c0_0] : memref<16x32xf32, #tpu.memory_space<vmem>>, vector<16x32xf32>
    %1 = arith.truncf %0 : vector<16x32xf32> to vector<16x32xbf16>
    %c0_1 = arith.constant 0 : index
    %c0_2 = arith.constant 0 : index
    %2 = vector.load %arg2[%c0_1, %c0_2] : memref<32x96xbf16, #tpu.memory_space<vmem>>, vector<32x96xbf16>
    %cst = arith.constant dense<0.000000e+00> : vector<16x96xf32>
    %3 = tpu.matmul %1, %2, %cst {dimension_numbers = #tpu.dot_dimension_numbers<[1], [0], [0], [1], [0, 0, 1, 1], [], []>} : vector<16x32xbf16>, vector<32x96xbf16>, vector<16x96xf32> -> vector<16x96xf32>
    %c0_3 = arith.constant 0 : index
    %c0_4 = arith.constant 0 : index
    %4 = vector.load %arg3[%c0_3, %c0_4] : memref<1x96xf32, #tpu.memory_space<vmem>>, vector<1x96xf32>
    %5 = vector.broadcast %4 : vector<1x96xf32> to vector<16x96xf32>
    %6 = arith.addf %3, %5 : vector<16x96xf32>
    %7 = vector.extract_strided_slice %6 {offsets = [0, 0], sizes = [16, 32], strides = [1, 1]} : vector<16x96xf32> to vector<16x32xf32>
    %c0_5 = arith.constant 0 : index
    %c0_6 = arith.constant 0 : index
    %8 = vector.load %arg4[%c0_5, %c0_6] : memref<16x32xf32, #tpu.memory_space<vmem>>, vector<16x32xf32>
    tpu.vector_store %arg4[%c0_5, %c0_6], %7 {strides = array<i32>} : memref<16x32xf32, #tpu.memory_space<vmem>>, vector<16x32xf32>,
    %9 = vector.extract_strided_slice %6 {offsets = [0, 32], sizes = [16, 32], strides = [1, 1]} : vector<16x96xf32> to vector<16x32xf32>
    %c0_7 = arith.constant 0 : index
    %c0_8 = arith.constant 0 : index
    %10 = vector.load %arg5[%c0_7, %c0_8] : memref<16x32xf32, #tpu.memory_space<vmem>>, vector<16x32xf32>
    tpu.vector_store %arg5[%c0_7, %c0_8], %9 {strides = array<i32>} : memref<16x32xf32, #tpu.memory_space<vmem>>, vector<16x32xf32>,
    %11 = vector.extract_strided_slice %6 {offsets = [0, 64], sizes = [16, 32], strides = [1, 1]} : vector<16x96xf32> to vector<16x32xf32>
    %c0_9 = arith.constant 0 : index
    %c0_10 = arith.constant 0 : index
    %12 = vector.load %arg6[%c0_9, %c0_10] : memref<16x32xf32, #tpu.memory_space<vmem>>, vector<16x32xf32>
    tpu.vector_store %arg6[%c0_9, %c0_10], %11 {strides = array<i32>} : memref<16x32xf32, #tpu.memory_space<vmem>>, vector<16x32xf32>,
    return
  }
  func.func @transform_0(%arg0: i32) -> (i32, i32) {
    %c0_i32 = arith.constant 0 : i32
    %c0_i32_0 = arith.constant 0 : i32
    return %arg0, %c0_i32 : i32, i32
  }
  func.func @transform_1(%arg0: i32) -> (i32, i32) {
    %c0_i32 = arith.constant 0 : i32
    %c0_i32_0 = arith.constant 0 : i32
    %c0_i32_1 = arith.constant 0 : i32
    return %c0_i32, %c0_i32_0 : i32, i32
  }
  func.func @transform_2(%arg0: i32) -> (i32, i32) {
    %c0_i32 = arith.constant 0 : i32
    %c0_i32_0 = arith.constant 0 : i32
    %c0_i32_1 = arith.constant 0 : i32
    return %c0_i32, %c0_i32_0 : i32, i32
  }
  func.func @transform_3(%arg0: i32) -> (i32, i32) {
    %c0_i32 = arith.constant 0 : i32
    %c0_i32_0 = arith.constant 0 : i32
    return %arg0, %c0_i32 : i32, i32
  }
  func.func @transform_4(%arg0: i32) -> (i32, i32) {
    %c0_i32 = arith.constant 0 : i32
    %c0_i32_0 = arith.constant 0 : i32
    return %arg0, %c0_i32 : i32, i32
  }
  func.func @transform_5(%arg0: i32) -> (i32, i32) {
    %c0_i32 = arith.constant 0 : i32
    %c0_i32_0 = arith.constant 0 : i32
    return %arg0, %c0_i32 : i32, i32
  }
}

module attributes {stable_mosaic.version = 11 : i64} {
  func.func @_ln_kernel(%arg0: i32, %arg1: memref<16x32xf32, #tpu.memory_space<vmem>>, %arg2: memref<1x32xf32, #tpu.memory_space<vmem>>, %arg3: memref<1x32xf32, #tpu.memory_space<vmem>>, %arg4: memref<16x32xf32, #tpu.memory_space<vmem>>) attributes {dimension_semantics = [#tpu.dimension_semantics<parallel>], iteration_bounds = array<i64: 1>, scalar_prefetch = 0 : i64, scratch_operands = 0 : i64, tpu.core_type = #tpu.core_type<tc>, window_params = [{transform_indices = @transform_0, window_bounds = array<i64: 16, 32>}, {pipeline_mode = #tpu.pipeline_mode<synchronous>, transform_indices = @transform_1, window_bounds = array<i64: 1, 32>}, {pipeline_mode = #tpu.pipeline_mode<synchronous>, transform_indices = @transform_2, window_bounds = array<i64: 1, 32>}, {transform_indices = @transform_3, window_bounds = array<i64: 16, 32>}]} {
    %c0 = arith.constant 0 : index
    %c0_0 = arith.constant 0 : index
    %0 = vector.load %arg1[%c0, %c0_0] : memref<16x32xf32, #tpu.memory_space<vmem>>, vector<16x32xf32>
    %c0_1 = arith.constant 0 : index
    %c0_2 = arith.constant 0 : index
    %1 = vector.load %arg2[%c0_1, %c0_2] : memref<1x32xf32, #tpu.memory_space<vmem>>, vector<1x32xf32>
    %c0_3 = arith.constant 0 : index
    %c0_4 = arith.constant 0 : index
    %2 = vector.load %arg3[%c0_3, %c0_4] : memref<1x32xf32, #tpu.memory_space<vmem>>, vector<1x32xf32>
    %cst = arith.constant dense<0.000000e+00> : vector<16xf32>
    %3 = vector.multi_reduction <add>, %0, %cst [1] : vector<16x32xf32> to vector<16xf32>
    %4 = vector.shape_cast %3 : vector<16xf32> to vector<16x1xf32>
    %cst_5 = arith.constant 3.200000e+01 : f32
    %5 = vector.broadcast %cst_5 : f32 to vector<16x1xf32>
    %6 = arith.divf %4, %5 : vector<16x1xf32>
    %7 = vector.broadcast %6 : vector<16x1xf32> to vector<16x32xf32>
    %8 = arith.subf %0, %7 : vector<16x32xf32>
    %9 = arith.mulf %8, %8 : vector<16x32xf32>
    %cst_6 = arith.constant dense<0.000000e+00> : vector<16xf32>
    %10 = vector.multi_reduction <add>, %9, %cst_6 [1] : vector<16x32xf32> to vector<16xf32>
    %11 = vector.shape_cast %10 : vector<16xf32> to vector<16x1xf32>
    %cst_7 = arith.constant 3.200000e+01 : f32
    %12 = vector.broadcast %cst_7 : f32 to vector<16x1xf32>
    %13 = arith.divf %11, %12 : vector<16x1xf32>
    %14 = vector.broadcast %6 : vector<16x1xf32> to vector<16x32xf32>
    %15 = arith.subf %0, %14 : vector<16x32xf32>
    %cst_8 = arith.constant 9.99999996E-13 : f32
    %16 = vector.broadcast %cst_8 : f32 to vector<16x1xf32>
    %17 = arith.addf %13, %16 : vector<16x1xf32>
    %18 = math.rsqrt %17 : vector<16x1xf32>
    %19 = vector.broadcast %18 : vector<16x1xf32> to vector<16x32xf32>
    %20 = arith.mulf %15, %19 : vector<16x32xf32>
    %21 = vector.broadcast %1 : vector<1x32xf32> to vector<16x32xf32>
    %22 = arith.mulf %20, %21 : vector<16x32xf32>
    %23 = vector.broadcast %2 : vector<1x32xf32> to vector<16x32xf32>
    %24 = arith.addf %22, %23 : vector<16x32xf32>
    %c0_9 = arith.constant 0 : index
    %c0_10 = arith.constant 0 : index
    %25 = vector.load %arg4[%c0_9, %c0_10] : memref<16x32xf32, #tpu.memory_space<vmem>>, vector<16x32xf32>
    tpu.vector_store %arg4[%c0_9, %c0_10], %24 {strides = array<i32>} : memref<16x32xf32, #tpu.memory_space<vmem>>, vector<16x32xf32>,
    return
  }
  func.func @transform_0(%arg0: i32) -> (i32, i32) {
    %c0_i32 = arith.constant 0 : i32
    %c0_i32_0 = arith.constant 0 : i32
    return %arg0, %c0_i32 : i32, i32
  }
  func.func @transform_1(%arg0: i32) -> (i32, i32) {
    %c0_i32 = arith.constant 0 : i32
    %c0_i32_0 = arith.constant 0 : i32
    %c0_i32_1 = arith.constant 0 : i32
    return %c0_i32, %c0_i32_0 : i32, i32
  }
  func.func @transform_2(%arg0: i32) -> (i32, i32) {
    %c0_i32 = arith.constant 0 : i32
    %c0_i32_0 = arith.constant 0 : i32
    %c0_i32_1 = arith.constant 0 : i32
    return %c0_i32, %c0_i32_0 : i32, i32
  }
  func.func @transform_3(%arg0: i32) -> (i32, i32) {
    %c0_i32 = arith.constant 0 : i32
    %c0_i32_0 = arith.constant 0 : i32
    return %arg0, %c0_i32 : i32, i32
  }
}

module attributes {stable_mosaic.version = 11 : i64} {
  func.func @_proj_add_ln_kernel(%arg0: i32, %arg1: memref<16x32xf32, #tpu.memory_space<vmem>>, %arg2: memref<16x32xf32, #tpu.memory_space<vmem>>, %arg3: memref<32x32xbf16, #tpu.memory_space<vmem>>, %arg4: memref<1x32xf32, #tpu.memory_space<vmem>>, %arg5: memref<1x32xf32, #tpu.memory_space<vmem>>, %arg6: memref<1x32xf32, #tpu.memory_space<vmem>>, %arg7: memref<16x32xf32, #tpu.memory_space<vmem>>) attributes {dimension_semantics = [#tpu.dimension_semantics<parallel>], iteration_bounds = array<i64: 1>, scalar_prefetch = 0 : i64, scratch_operands = 0 : i64, tpu.core_type = #tpu.core_type<tc>, window_params = [{transform_indices = @transform_0, window_bounds = array<i64: 16, 32>}, {transform_indices = @transform_1, window_bounds = array<i64: 16, 32>}, {pipeline_mode = #tpu.pipeline_mode<synchronous>, transform_indices = @transform_2, window_bounds = array<i64: 32, 32>}, {pipeline_mode = #tpu.pipeline_mode<synchronous>, transform_indices = @transform_3, window_bounds = array<i64: 1, 32>}, {pipeline_mode = #tpu.pipeline_mode<synchronous>, transform_indices = @transform_4, window_bounds = array<i64: 1, 32>}, {pipeline_mode = #tpu.pipeline_mode<synchronous>, transform_indices = @transform_5, window_bounds = array<i64: 1, 32>}, {transform_indices = @transform_6, window_bounds = array<i64: 16, 32>}]} {
    %c0 = arith.constant 0 : index
    %c0_0 = arith.constant 0 : index
    %0 = vector.load %arg1[%c0, %c0_0] : memref<16x32xf32, #tpu.memory_space<vmem>>, vector<16x32xf32>
    %1 = arith.truncf %0 : vector<16x32xf32> to vector<16x32xbf16>
    %c0_1 = arith.constant 0 : index
    %c0_2 = arith.constant 0 : index
    %2 = vector.load %arg3[%c0_1, %c0_2] : memref<32x32xbf16, #tpu.memory_space<vmem>>, vector<32x32xbf16>
    %cst = arith.constant dense<0.000000e+00> : vector<16x32xf32>
    %3 = tpu.matmul %1, %2, %cst {dimension_numbers = #tpu.dot_dimension_numbers<[1], [0], [0], [1], [0, 0, 1, 1], [], []>} : vector<16x32xbf16>, vector<32x32xbf16>, vector<16x32xf32> -> vector<16x32xf32>
    %c0_3 = arith.constant 0 : index
    %c0_4 = arith.constant 0 : index
    %4 = vector.load %arg4[%c0_3, %c0_4] : memref<1x32xf32, #tpu.memory_space<vmem>>, vector<1x32xf32>
    %5 = vector.broadcast %4 : vector<1x32xf32> to vector<16x32xf32>
    %6 = arith.addf %3, %5 : vector<16x32xf32>
    %c0_5 = arith.constant 0 : index
    %c0_6 = arith.constant 0 : index
    %7 = vector.load %arg2[%c0_5, %c0_6] : memref<16x32xf32, #tpu.memory_space<vmem>>, vector<16x32xf32>
    %8 = arith.addf %6, %7 : vector<16x32xf32>
    %c0_7 = arith.constant 0 : index
    %c0_8 = arith.constant 0 : index
    %9 = vector.load %arg5[%c0_7, %c0_8] : memref<1x32xf32, #tpu.memory_space<vmem>>, vector<1x32xf32>
    %c0_9 = arith.constant 0 : index
    %c0_10 = arith.constant 0 : index
    %10 = vector.load %arg6[%c0_9, %c0_10] : memref<1x32xf32, #tpu.memory_space<vmem>>, vector<1x32xf32>
    %cst_11 = arith.constant dense<0.000000e+00> : vector<16xf32>
    %11 = vector.multi_reduction <add>, %8, %cst_11 [1] : vector<16x32xf32> to vector<16xf32>
    %12 = vector.shape_cast %11 : vector<16xf32> to vector<16x1xf32>
    %cst_12 = arith.constant 3.200000e+01 : f32
    %13 = vector.broadcast %cst_12 : f32 to vector<16x1xf32>
    %14 = arith.divf %12, %13 : vector<16x1xf32>
    %15 = vector.broadcast %14 : vector<16x1xf32> to vector<16x32xf32>
    %16 = arith.subf %8, %15 : vector<16x32xf32>
    %17 = arith.mulf %16, %16 : vector<16x32xf32>
    %cst_13 = arith.constant dense<0.000000e+00> : vector<16xf32>
    %18 = vector.multi_reduction <add>, %17, %cst_13 [1] : vector<16x32xf32> to vector<16xf32>
    %19 = vector.shape_cast %18 : vector<16xf32> to vector<16x1xf32>
    %cst_14 = arith.constant 3.200000e+01 : f32
    %20 = vector.broadcast %cst_14 : f32 to vector<16x1xf32>
    %21 = arith.divf %19, %20 : vector<16x1xf32>
    %22 = vector.broadcast %14 : vector<16x1xf32> to vector<16x32xf32>
    %23 = arith.subf %8, %22 : vector<16x32xf32>
    %cst_15 = arith.constant 9.99999996E-13 : f32
    %24 = vector.broadcast %cst_15 : f32 to vector<16x1xf32>
    %25 = arith.addf %21, %24 : vector<16x1xf32>
    %26 = math.rsqrt %25 : vector<16x1xf32>
    %27 = vector.broadcast %26 : vector<16x1xf32> to vector<16x32xf32>
    %28 = arith.mulf %23, %27 : vector<16x32xf32>
    %29 = vector.broadcast %9 : vector<1x32xf32> to vector<16x32xf32>
    %30 = arith.mulf %28, %29 : vector<16x32xf32>
    %31 = vector.broadcast %10 : vector<1x32xf32> to vector<16x32xf32>
    %32 = arith.addf %30, %31 : vector<16x32xf32>
    %c0_16 = arith.constant 0 : index
    %c0_17 = arith.constant 0 : index
    %33 = vector.load %arg7[%c0_16, %c0_17] : memref<16x32xf32, #tpu.memory_space<vmem>>, vector<16x32xf32>
    tpu.vector_store %arg7[%c0_16, %c0_17], %32 {strides = array<i32>} : memref<16x32xf32, #tpu.memory_space<vmem>>, vector<16x32xf32>,
    return
  }
  func.func @transform_0(%arg0: i32) -> (i32, i32) {
    %c0_i32 = arith.constant 0 : i32
    %c0_i32_0 = arith.constant 0 : i32
    return %arg0, %c0_i32 : i32, i32
  }
  func.func @transform_1(%arg0: i32) -> (i32, i32) {
    %c0_i32 = arith.constant 0 : i32
    %c0_i32_0 = arith.constant 0 : i32
    return %arg0, %c0_i32 : i32, i32
  }
  func.func @transform_2(%arg0: i32) -> (i32, i32) {
    %c0_i32 = arith.constant 0 : i32
    %c0_i32_0 = arith.constant 0 : i32
    %c0_i32_1 = arith.constant 0 : i32
    return %c0_i32, %c0_i32_0 : i32, i32
  }
  func.func @transform_3(%arg0: i32) -> (i32, i32) {
    %c0_i32 = arith.constant 0 : i32
    %c0_i32_0 = arith.constant 0 : i32
    %c0_i32_1 = arith.constant 0 : i32
    return %c0_i32, %c0_i32_0 : i32, i32
  }
  func.func @transform_4(%arg0: i32) -> (i32, i32) {
    %c0_i32 = arith.constant 0 : i32
    %c0_i32_0 = arith.constant 0 : i32
    %c0_i32_1 = arith.constant 0 : i32
    return %c0_i32, %c0_i32_0 : i32, i32
  }
  func.func @transform_5(%arg0: i32) -> (i32, i32) {
    %c0_i32 = arith.constant 0 : i32
    %c0_i32_0 = arith.constant 0 : i32
    %c0_i32_1 = arith.constant 0 : i32
    return %c0_i32, %c0_i32_0 : i32, i32
  }
  func.func @transform_6(%arg0: i32) -> (i32, i32) {
    %c0_i32 = arith.constant 0 : i32
    %c0_i32_0 = arith.constant 0 : i32
    return %arg0, %c0_i32 : i32, i32
  }
}

module attributes {stable_mosaic.version = 11 : i64} {
  func.func @_mha_kernel(%arg0: i32, %arg1: i32, %arg2: memref<1x8x32xf32, #tpu.memory_space<vmem>>, %arg3: memref<1x8x32xf32, #tpu.memory_space<vmem>>, %arg4: memref<1x8x32xf32, #tpu.memory_space<vmem>>, %arg5: memref<1x1x8xf32, #tpu.memory_space<vmem>>, %arg6: memref<1x8x32xf32, #tpu.memory_space<vmem>>, %arg7: memref<8x32xf32, #tpu.memory_space<vmem>>) attributes {dimension_semantics = [#tpu.dimension_semantics<parallel>, #tpu.dimension_semantics<parallel>], iteration_bounds = array<i64: 2, 1>, scalar_prefetch = 0 : i64, scratch_operands = 1 : i64, tpu.core_type = #tpu.core_type<tc>, window_params = [{transform_indices = @transform_0, window_bounds = array<i64: 1, 8, 32>}, {transform_indices = @transform_1, window_bounds = array<i64: 1, 8, 32>}, {transform_indices = @transform_2, window_bounds = array<i64: 1, 8, 32>}, {transform_indices = @transform_3, window_bounds = array<i64: 1, 1, 8>}, {transform_indices = @transform_4, window_bounds = array<i64: 1, 8, 32>}]} {
    %c0 = arith.constant 0 : index
    %c0_0 = arith.constant 0 : index
    %c0_1 = arith.constant 0 : index
    %0 = vector.load %arg2[%c0, %c0_0, %c0_1] : memref<1x8x32xf32, #tpu.memory_space<vmem>>, vector<1x8x32xf32>
    %1 = vector.shape_cast %0 : vector<1x8x32xf32> to vector<8x32xf32>
    %cst = arith.constant 2.500000e-01 : f32
    %2 = vector.broadcast %cst : f32 to vector<8x32xf32>
    %3 = arith.mulf %1, %2 : vector<8x32xf32>
    %4 = arith.truncf %3 : vector<8x32xf32> to vector<8x32xbf16>
    %c0_2 = arith.constant 0 : index
    %c0_3 = arith.constant 0 : index
    %c0_4 = arith.constant 0 : index
    %5 = vector.load %arg3[%c0_2, %c0_3, %c0_4] : memref<1x8x32xf32, #tpu.memory_space<vmem>>, vector<1x8x32xf32>
    %6 = vector.shape_cast %5 : vector<1x8x32xf32> to vector<8x32xf32>
    %7 = arith.truncf %6 : vector<8x32xf32> to vector<8x32xbf16>
    %c0_5 = arith.constant 0 : index
    %c0_6 = arith.constant 0 : index
    %c0_7 = arith.constant 0 : index
    %8 = vector.load %arg4[%c0_5, %c0_6, %c0_7] : memref<1x8x32xf32, #tpu.memory_space<vmem>>, vector<1x8x32xf32>
    %9 = vector.shape_cast %8 : vector<1x8x32xf32> to vector<8x32xf32>
    %10 = arith.truncf %9 : vector<8x32xf32> to vector<8x32xbf16>
    %c0_8 = arith.constant 0 : index
    %c0_9 = arith.constant 0 : index
    %c0_10 = arith.constant 0 : index
    %11 = vector.load %arg5[%c0_8, %c0_9, %c0_10] : memref<1x1x8xf32, #tpu.memory_space<vmem>>, vector<1x1x8xf32>
    %12 = vector.shape_cast %11 : vector<1x1x8xf32> to vector<1x8xf32>
    %13 = vector.shape_cast %12 : vector<1x8xf32> to vector<1x8xf32>
    %14 = vector.broadcast %13 : vector<1x8xf32> to vector<8x8xf32>
    %15 = vector.extract_strided_slice %4 {offsets = [0, 0], sizes = [8, 16], strides = [1, 1]} : vector<8x32xbf16> to vector<8x16xbf16>
    %16 = vector.extract_strided_slice %7 {offsets = [0, 0], sizes = [8, 16], strides = [1, 1]} : vector<8x32xbf16> to vector<8x16xbf16>
    %17 = vector.extract_strided_slice %10 {offsets = [0, 0], sizes = [8, 16], strides = [1, 1]} : vector<8x32xbf16> to vector<8x16xbf16>
    %cst_11 = arith.constant dense<0.000000e+00> : vector<8x8xf32>
    %18 = tpu.matmul %15, %16, %cst_11 {dimension_numbers = #tpu.dot_dimension_numbers<[1], [1], [0], [0], [0, 0, 1, 0], [], []>} : vector<8x16xbf16>, vector<8x16xbf16>, vector<8x8xf32> -> vector<8x8xf32>
    %19 = arith.addf %18, %14 : vector<8x8xf32>
    %cst_12 = arith.constant dense<0xFF800000> : vector<8xf32>
    %20 = vector.multi_reduction <maximumf>, %19, %cst_12 [1] : vector<8x8xf32> to vector<8xf32>
    %21 = vector.shape_cast %20 : vector<8xf32> to vector<8x1xf32>
    %22 = vector.broadcast %21 : vector<8x1xf32> to vector<8x8xf32>
    %23 = arith.subf %19, %22 : vector<8x8xf32>
    %24 = math.exp %23 : vector<8x8xf32>
    %cst_13 = arith.constant dense<0.000000e+00> : vector<8xf32>
    %25 = vector.multi_reduction <add>, %24, %cst_13 [1] : vector<8x8xf32> to vector<8xf32>
    %26 = vector.shape_cast %25 : vector<8xf32> to vector<8x1xf32>
    %27 = arith.truncf %24 : vector<8x8xf32> to vector<8x8xbf16>
    %cst_14 = arith.constant dense<0.000000e+00> : vector<8x16xf32>
    %28 = tpu.matmul %27, %17, %cst_14 {dimension_numbers = #tpu.dot_dimension_numbers<[1], [0], [0], [1], [0, 0, 1, 1], [], []>} : vector<8x8xbf16>, vector<8x16xbf16>, vector<8x16xf32> -> vector<8x16xf32>
    %cst_15 = arith.constant 1.000000e+00 : f32
    %29 = vector.broadcast %cst_15 : f32 to vector<8x1xf32>
    %30 = arith.divf %29, %26 : vector<8x1xf32>
    %31 = vector.broadcast %30 : vector<8x1xf32> to vector<8x16xf32>
    %32 = arith.mulf %28, %31 : vector<8x16xf32>
    %c0_16 = arith.constant 0 : index
    %c0_17 = arith.constant 0 : index
    %33 = vector.load %arg7[%c0_16, %c0_17] : memref<8x32xf32, #tpu.memory_space<vmem>>, vector<8x16xf32>
    tpu.vector_store %arg7[%c0_16, %c0_17], %32 {strides = array<i32>} : memref<8x32xf32, #tpu.memory_space<vmem>>, vector<8x16xf32>,
    %34 = vector.extract_strided_slice %4 {offsets = [0, 16], sizes = [8, 16], strides = [1, 1]} : vector<8x32xbf16> to vector<8x16xbf16>
    %35 = vector.extract_strided_slice %7 {offsets = [0, 16], sizes = [8, 16], strides = [1, 1]} : vector<8x32xbf16> to vector<8x16xbf16>
    %36 = vector.extract_strided_slice %10 {offsets = [0, 16], sizes = [8, 16], strides = [1, 1]} : vector<8x32xbf16> to vector<8x16xbf16>
    %cst_18 = arith.constant dense<0.000000e+00> : vector<8x8xf32>
    %37 = tpu.matmul %34, %35, %cst_18 {dimension_numbers = #tpu.dot_dimension_numbers<[1], [1], [0], [0], [0, 0, 1, 0], [], []>} : vector<8x16xbf16>, vector<8x16xbf16>, vector<8x8xf32> -> vector<8x8xf32>
    %38 = arith.addf %37, %14 : vector<8x8xf32>
    %cst_19 = arith.constant dense<0xFF800000> : vector<8xf32>
    %39 = vector.multi_reduction <maximumf>, %38, %cst_19 [1] : vector<8x8xf32> to vector<8xf32>
    %40 = vector.shape_cast %39 : vector<8xf32> to vector<8x1xf32>
    %41 = vector.broadcast %40 : vector<8x1xf32> to vector<8x8xf32>
    %42 = arith.subf %38, %41 : vector<8x8xf32>
    %43 = math.exp %42 : vector<8x8xf32>
    %cst_20 = arith.constant dense<0.000000e+00> : vector<8xf32>
    %44 = vector.multi_reduction <add>, %43, %cst_20 [1] : vector<8x8xf32> to vector<8xf32>
    %45 = vector.shape_cast %44 : vector<8xf32> to vector<8x1xf32>
    %46 = arith.truncf %43 : vector<8x8xf32> to vector<8x8xbf16>
    %cst_21 = arith.constant dense<0.000000e+00> : vector<8x16xf32>
    %47 = tpu.matmul %46, %36, %cst_21 {dimension_numbers = #tpu.dot_dimension_numbers<[1], [0], [0], [1], [0, 0, 1, 1], [], []>} : vector<8x8xbf16>, vector<8x16xbf16>, vector<8x16xf32> -> vector<8x16xf32>
    %cst_22 = arith.constant 1.000000e+00 : f32
    %48 = vector.broadcast %cst_22 : f32 to vector<8x1xf32>
    %49 = arith.divf %48, %45 : vector<8x1xf32>
    %50 = vector.broadcast %49 : vector<8x1xf32> to vector<8x16xf32>
    %51 = arith.mulf %47, %50 : vector<8x16xf32>
    %c0_23 = arith.constant 0 : index
    %c16 = arith.constant 16 : index
    %52 = vector.load %arg7[%c0_23, %c16] : memref<8x32xf32, #tpu.memory_space<vmem>>, vector<8x16xf32>
    tpu.vector_store %arg7[%c0_23, %c16], %51 {strides = array<i32>} : memref<8x32xf32, #tpu.memory_space<vmem>>, vector<8x16xf32>,
    %c0_24 = arith.constant 0 : index
    %c0_25 = arith.constant 0 : index
    %53 = vector.load %arg7[%c0_24, %c0_25] : memref<8x32xf32, #tpu.memory_space<vmem>>, vector<8x32xf32>
    %c0_26 = arith.constant 0 : index
    %c0_27 = arith.constant 0 : index
    %c0_28 = arith.constant 0 : index
    %54 = vector.load %arg6[%c0_26, %c0_27, %c0_28] : memref<1x8x32xf32, #tpu.memory_space<vmem>>, vector<1x8x32xf32>
    %55 = vector.shape_cast %54 : vector<1x8x32xf32> to vector<8x32xf32>
    %56 = vector.shape_cast %53 : vector<8x32xf32> to vector<1x8x32xf32>
    tpu.vector_store %arg6[%c0_26, %c0_27, %c0_28], %56 {strides = array<i32>} : memref<1x8x32xf32, #tpu.memory_space<vmem>>, vector<1x8x32xf32>,
    return
  }
  func.func @transform_0(%arg0: i32, %arg1: i32) -> (i32, i32, i32) {
    %c0_i32 = arith.constant 0 : i32
    %c0_i32_0 = arith.constant 0 : i32
    return %arg0, %arg1, %c0_i32 : i32, i32, i32
  }
  func.func @transform_1(%arg0: i32, %arg1: i32) -> (i32, i32, i32) {
    %c0_i32 = arith.constant 0 : i32
    %c0_i32_0 = arith.constant 0 : i32
    %c0_i32_1 = arith.constant 0 : i32
    return %arg0, %c0_i32, %c0_i32_0 : i32, i32, i32
  }
  func.func @transform_2(%arg0: i32, %arg1: i32) -> (i32, i32, i32) {
    %c0_i32 = arith.constant 0 : i32
    %c0_i32_0 = arith.constant 0 : i32
    %c0_i32_1 = arith.constant 0 : i32
    return %arg0, %c0_i32, %c0_i32_0 : i32, i32, i32
  }
  func.func @transform_3(%arg0: i32, %arg1: i32) -> (i32, i32, i32) {
    %c0_i32 = arith.constant 0 : i32
    %c0_i32_0 = arith.constant 0 : i32
    %c0_i32_1 = arith.constant 0 : i32
    return %arg0, %c0_i32, %c0_i32_0 : i32, i32, i32
  }
  func.func @transform_4(%arg0: i32, %arg1: i32) -> (i32, i32, i32) {
    %c0_i32 = arith.constant 0 : i32
    %c0_i32_0 = arith.constant 0 : i32
    return %arg0, %arg1, %c0_i32 : i32, i32, i32
  }
}

module attributes {stable_mosaic.version = 11 : i64} {
  func.func @_ffn_add_ln_kernel(%arg0: i32, %arg1: memref<16x32xf32, #tpu.memory_space<vmem>>, %arg2: memref<32x64xbf16, #tpu.memory_space<vmem>>, %arg3: memref<1x64xf32, #tpu.memory_space<vmem>>, %arg4: memref<64x32xbf16, #tpu.memory_space<vmem>>, %arg5: memref<1x32xf32, #tpu.memory_space<vmem>>, %arg6: memref<1x32xf32, #tpu.memory_space<vmem>>, %arg7: memref<1x32xf32, #tpu.memory_space<vmem>>, %arg8: memref<16x32xf32, #tpu.memory_space<vmem>>) attributes {dimension_semantics = [#tpu.dimension_semantics<parallel>], iteration_bounds = array<i64: 1>, scalar_prefetch = 0 : i64, scratch_operands = 0 : i64, tpu.core_type = #tpu.core_type<tc>, window_params = [{transform_indices = @transform_0, window_bounds = array<i64: 16, 32>}, {pipeline_mode = #tpu.pipeline_mode<synchronous>, transform_indices = @transform_1, window_bounds = array<i64: 32, 64>}, {pipeline_mode = #tpu.pipeline_mode<synchronous>, transform_indices = @transform_2, window_bounds = array<i64: 1, 64>}, {pipeline_mode = #tpu.pipeline_mode<synchronous>, transform_indices = @transform_3, window_bounds = array<i64: 64, 32>}, {pipeline_mode = #tpu.pipeline_mode<synchronous>, transform_indices = @transform_4, window_bounds = array<i64: 1, 32>}, {pipeline_mode = #tpu.pipeline_mode<synchronous>, transform_indices = @transform_5, window_bounds = array<i64: 1, 32>}, {pipeline_mode = #tpu.pipeline_mode<synchronous>, transform_indices = @transform_6, window_bounds = array<i64: 1, 32>}, {transform_indices = @transform_7, window_bounds = array<i64: 16, 32>}]} {
    %c0 = arith.constant 0 : index
    %c0_0 = arith.constant 0 : index
    %0 = vector.load %arg1[%c0, %c0_0] : memref<16x32xf32, #tpu.memory_space<vmem>>, vector<16x32xf32>
    %1 = arith.truncf %0 : vector<16x32xf32> to vector<16x32xbf16>
    %c0_1 = arith.constant 0 : index
    %c0_2 = arith.constant 0 : index
    %2 = vector.load %arg2[%c0_1, %c0_2] : memref<32x64xbf16, #tpu.memory_space<vmem>>, vector<32x64xbf16>
    %cst = arith.constant dense<0.000000e+00> : vector<16x64xf32>
    %3 = tpu.matmul %1, %2, %cst {dimension_numbers = #tpu.dot_dimension_numbers<[1], [0], [0], [1], [0, 0, 1, 1], [], []>} : vector<16x32xbf16>, vector<32x64xbf16>, vector<16x64xf32> -> vector<16x64xf32>
    %c0_3 = arith.constant 0 : index
    %c0_4 = arith.constant 0 : index
    %4 = vector.load %arg3[%c0_3, %c0_4] : memref<1x64xf32, #tpu.memory_space<vmem>>, vector<1x64xf32>
    %5 = vector.broadcast %4 : vector<1x64xf32> to vector<16x64xf32>
    %6 = arith.addf %3, %5 : vector<16x64xf32>
    %cst_5 = arith.constant 5.000000e-01 : f32
    %7 = vector.broadcast %cst_5 : f32 to vector<16x64xf32>
    %8 = arith.mulf %7, %6 : vector<16x64xf32>
    %cst_6 = arith.constant 0.707106769 : f32
    %9 = vector.broadcast %cst_6 : f32 to vector<16x64xf32>
    %10 = arith.mulf %6, %9 : vector<16x64xf32>
    %11 = math.absf %10 : vector<16x64xf32>
    %cst_7 = arith.constant 0.327591091 : f32
    %12 = vector.broadcast %cst_7 : f32 to vector<16x64xf32>
    %13 = arith.mulf %12, %11 : vector<16x64xf32>
    %cst_8 = arith.constant 1.000000e+00 : f32
    %14 = vector.broadcast %cst_8 : f32 to vector<16x64xf32>
    %15 = arith.addf %14, %13 : vector<16x64xf32>
    %cst_9 = arith.constant 1.000000e+00 : f32
    %16 = vector.broadcast %cst_9 : f32 to vector<16x64xf32>
    %17 = arith.divf %16, %15 : vector<16x64xf32>
    %cst_10 = arith.constant 1.06140542 : f32
    %18 = vector.broadcast %cst_10 : f32 to vector<16x64xf32>
    %19 = arith.mulf %18, %17 : vector<16x64xf32>
    %cst_11 = arith.constant -1.45315206 : f32
    %20 = vector.broadcast %cst_11 : f32 to vector<16x64xf32>
    %21 = arith.addf %19, %20 : vector<16x64xf32>
    %22 = arith.mulf %21, %17 : vector<16x64xf32>
    %cst_12 = arith.constant 1.42141378 : f32
    %23 = vector.broadcast %cst_12 : f32 to vector<16x64xf32>
    %24 = arith.addf %22, %23 : vector<16x64xf32>
    %25 = arith.mulf %24, %17 : vector<16x64xf32>
    %cst_13 = arith.constant -0.284496725 : f32
    %26 = vector.broadcast %cst_13 : f32 to vector<16x64xf32>
    %27 = arith.addf %25, %26 : vector<16x64xf32>
    %28 = arith.mulf %27, %17 : vector<16x64xf32>
    %cst_14 = arith.constant 0.254829586 : f32
    %29 = vector.broadcast %cst_14 : f32 to vector<16x64xf32>
    %30 = arith.addf %28, %29 : vector<16x64xf32>
    %31 = arith.mulf %30, %17 : vector<16x64xf32>
    %cst_15 = arith.constant 0.000000e+00 : f32
    %32 = vector.broadcast %cst_15 : f32 to vector<16x64xf32>
    %33 = arith.subf %32, %11 : vector<16x64xf32>
    %34 = arith.mulf %33, %11 : vector<16x64xf32>
    %35 = math.exp %34 : vector<16x64xf32>
    %36 = arith.mulf %31, %35 : vector<16x64xf32>
    %cst_16 = arith.constant 1.000000e+00 : f32
    %37 = vector.broadcast %cst_16 : f32 to vector<16x64xf32>
    %38 = arith.subf %37, %36 : vector<16x64xf32>
    %cst_17 = arith.constant 0.000000e+00 : f32
    %39 = vector.broadcast %cst_17 : f32 to vector<16x64xf32>
    %40 = arith.cmpf oge, %10, %39 : vector<16x64xf32>
    %cst_18 = arith.constant 0.000000e+00 : f32
    %41 = vector.broadcast %cst_18 : f32 to vector<16x64xf32>
    %42 = arith.subf %41, %38 : vector<16x64xf32>
    %43 = arith.select %40, %38, %42 : vector<16x64xi1>, vector<16x64xf32>
    %cst_19 = arith.constant 1.000000e+00 : f32
    %44 = vector.broadcast %cst_19 : f32 to vector<16x64xf32>
    %45 = arith.addf %44, %43 : vector<16x64xf32>
    %46 = arith.mulf %8, %45 : vector<16x64xf32>
    %47 = arith.truncf %46 : vector<16x64xf32> to vector<16x64xbf16>
    %c0_20 = arith.constant 0 : index
    %c0_21 = arith.constant 0 : index
    %48 = vector.load %arg4[%c0_20, %c0_21] : memref<64x32xbf16, #tpu.memory_space<vmem>>, vector<64x32xbf16>
    %cst_22 = arith.constant dense<0.000000e+00> : vector<16x32xf32>
    %49 = tpu.matmul %47, %48, %cst_22 {dimension_numbers = #tpu.dot_dimension_numbers<[1], [0], [0], [1], [0, 0, 1, 1], [], []>} : vector<16x64xbf16>, vector<64x32xbf16>, vector<16x32xf32> -> vector<16x32xf32>
    %c0_23 = arith.constant 0 : index
    %c0_24 = arith.constant 0 : index
    %50 = vector.load %arg5[%c0_23, %c0_24] : memref<1x32xf32, #tpu.memory_space<vmem>>, vector<1x32xf32>
    %51 = vector.broadcast %50 : vector<1x32xf32> to vector<16x32xf32>
    %52 = arith.addf %49, %51 : vector<16x32xf32>
    %53 = arith.addf %52, %0 : vector<16x32xf32>
    %c0_25 = arith.constant 0 : index
    %c0_26 = arith.constant 0 : index
    %54 = vector.load %arg6[%c0_25, %c0_26] : memref<1x32xf32, #tpu.memory_space<vmem>>, vector<1x32xf32>
    %c0_27 = arith.constant 0 : index
    %c0_28 = arith.constant 0 : index
    %55 = vector.load %arg7[%c0_27, %c0_28] : memref<1x32xf32, #tpu.memory_space<vmem>>, vector<1x32xf32>
    %cst_29 = arith.constant dense<0.000000e+00> : vector<16xf32>
    %56 = vector.multi_reduction <add>, %53, %cst_29 [1] : vector<16x32xf32> to vector<16xf32>
    %57 = vector.shape_cast %56 : vector<16xf32> to vector<16x1xf32>
    %cst_30 = arith.constant 3.200000e+01 : f32
    %58 = vector.broadcast %cst_30 : f32 to vector<16x1xf32>
    %59 = arith.divf %57, %58 : vector<16x1xf32>
    %60 = vector.broadcast %59 : vector<16x1xf32> to vector<16x32xf32>
    %61 = arith.subf %53, %60 : vector<16x32xf32>
    %62 = arith.mulf %61, %61 : vector<16x32xf32>
    %cst_31 = arith.constant dense<0.000000e+00> : vector<16xf32>
    %63 = vector.multi_reduction <add>, %62, %cst_31 [1] : vector<16x32xf32> to vector<16xf32>
    %64 = vector.shape_cast %63 : vector<16xf32> to vector<16x1xf32>
    %cst_32 = arith.constant 3.200000e+01 : f32
    %65 = vector.broadcast %cst_32 : f32 to vector<16x1xf32>
    %66 = arith.divf %64, %65 : vector<16x1xf32>
    %67 = vector.broadcast %59 : vector<16x1xf32> to vector<16x32xf32>
    %68 = arith.subf %53, %67 : vector<16x32xf32>
    %cst_33 = arith.constant 9.99999996E-13 : f32
    %69 = vector.broadcast %cst_33 : f32 to vector<16x1xf32>
    %70 = arith.addf %66, %69 : vector<16x1xf32>
    %71 = math.rsqrt %70 : vector<16x1xf32>
    %72 = vector.broadcast %71 : vector<16x1xf32> to vector<16x32xf32>
    %73 = arith.mulf %68, %72 : vector<16x32xf32>
    %74 = vector.broadcast %54 : vector<1x32xf32> to vector<16x32xf32>
    %75 = arith.mulf %73, %74 : vector<16x32xf32>
    %76 = vector.broadcast %55 : vector<1x32xf32> to vector<16x32xf32>
    %77 = arith.addf %75, %76 : vector<16x32xf32>
    %c0_34 = arith.constant 0 : index
    %c0_35 = arith.constant 0 : index
    %78 = vector.load %arg8[%c0_34, %c0_35] : memref<16x32xf32, #tpu.memory_space<vmem>>, vector<16x32xf32>
    tpu.vector_store %arg8[%c0_34, %c0_35], %77 {strides = array<i32>} : memref<16x32xf32, #tpu.memory_space<vmem>>, vector<16x32xf32>,
    return
  }
  func.func @transform_0(%arg0: i32) -> (i32, i32) {
    %c0_i32 = arith.constant 0 : i32
    %c0_i32_0 = arith.constant 0 : i32
    return %arg0, %c0_i32 : i32, i32
  }
  func.func @transform_1(%arg0: i32) -> (i32, i32) {
    %c0_i32 = arith.constant 0 : i32
    %c0_i32_0 = arith.constant 0 : i32
    %c0_i32_1 = arith.constant 0 : i32
    return %c0_i32, %c0_i32_0 : i32, i32
  }
  func.func @transform_2(%arg0: i32) -> (i32, i32) {
    %c0_i32 = arith.constant 0 : i32
    %c0_i32_0 = arith.constant 0 : i32
    %c0_i32_1 = arith.constant 0 : i32
    return %c0_i32, %c0_i32_0 : i32, i32
  }
  func.func @transform_3(%arg0: i32) -> (i32, i32) {
    %c0_i32 = arith.constant 0 : i32
    %c0_i32_0 = arith.constant 0 : i32
    %c0_i32_1 = arith.constant 0 : i32
    return %c0_i32, %c0_i32_0 : i32, i32
  }
  func.func @transform_4(%arg0: i32) -> (i32, i32) {
    %c0_i32 = arith.constant 0 : i32
    %c0_i32_0 = arith.constant 0 : i32
    %c0_i32_1 = arith.constant 0 : i32
    return %c0_i32, %c0_i32_0 : i32, i32
  }
  func.func @transform_5(%arg0: i32) -> (i32, i32) {
    %c0_i32 = arith.constant 0 : i32
    %c0_i32_0 = arith.constant 0 : i32
    %c0_i32_1 = arith.constant 0 : i32
    return %c0_i32, %c0_i32_0 : i32, i32
  }
  func.func @transform_6(%arg0: i32) -> (i32, i32) {
    %c0_i32 = arith.constant 0 : i32
    %c0_i32_0 = arith.constant 0 : i32
    %c0_i32_1 = arith.constant 0 : i32
    return %c0_i32, %c0_i32_0 : i32, i32
  }
  func.func @transform_7(%arg0: i32) -> (i32, i32) {
    %c0_i32 = arith.constant 0 : i32
    %c0_i32_0 = arith.constant 0 : i32
    return %arg0, %c0_i32 : i32, i32
  }
}

</mosaic_0001>

<llo_original>
// kernel: bert_forward.10
$region0: #{bert_forward.10}
  #allocation0 [shape = 'u32[]', space=smem, size = 0x4, offset = 0x4, fixed_abs, tag = 'smem constant byte address 0x4 - core index']
  #allocation1 [shape = 'u32[72,128]{1,0:T(1,128)}', space=vmem, size = 0x9000, scoped, tag = 'internal scratch']
  %s0 = inlined_call_operand.vmem [shape: f32[16,32], index: 0, kind: input, shape index: {}]
  %s1 = inlined_call_operand.vmem [shape: bf16[32,96], index: 1, kind: input, shape index: {}]
  %s2 = inlined_call_operand.vmem [shape: f32[1,96], index: 2, kind: input, shape index: {}]
  %s3 = inlined_call_operand.vmem [shape: f32[16,32], index: 3, kind: output, shape index: {0}]
  %s4 = inlined_call_operand.vmem [shape: f32[16,32], index: 4, kind: output, shape index: {1}]
  %s5 = inlined_call_operand.vmem [shape: f32[16,32], index: 5, kind: output, shape index: {2}]
  %6 = xla_tuple %s3, %s4, %s5
  %s7 = sld [smem:[#allocation0]]
  $region38: #{bert_forward.10} parent=0
    _
  %s9 = ssub.s32 1, %s7
  %s10 = scalar_select 0, %s9, %s7
  // Predicated region
  $region2: #{bert_forward.10} parent=0 // pred_check
    _
  $region3: #{bert_forward.10} parent=0 // pred_check_branch
    %12 = sbr.rel (0) target = $region5
  $region4: #{bert_forward.10} parent=0 // pred_region
    _
  $region5: #{bert_forward.10} parent=0 // pred_fallthru
    _
  // Predicated region
  $region6: #{bert_forward.10} parent=0 // pred_check
    _
  $region7: #{bert_forward.10} parent=0 // pred_check_branch
    %14 = sbr.rel (0) target = $region9
  $region8: #{bert_forward.10} parent=0 // pred_region
    _
  $region9: #{bert_forward.10} parent=0 // pred_fallthru
    _
  // Predicated region
  $region10: #{bert_forward.10} parent=0 // pred_check
    _
  $region11: #{bert_forward.10} parent=0 // pred_check_branch
    %16 = sbr.rel (0) target = $region13
  $region12: #{bert_forward.10} parent=0 // pred_region
    _
  $region13: #{bert_forward.10} parent=0 // pred_fallthru
    _
  %v18 = vld [vmem:[%s0] sm:$0xff]
  %v19 = vld [vmem:[%s0 + $0x8] sm:$0xff]
  %v20 = vpack.c.bf16 %v19, %v18
  %v21 = vld [vmem:[%s1] sm:$0xf]
  %v22 = vld [vmem:[%s1 + $0x4] sm:$0xf]
  %v23 = vld [vmem:[%s1 + $0x8] sm:$0xf]
  %v24 = vld [vmem:[%s1 + $0xc] sm:$0xf]
  %v25 = vld [vmem:[%s2] sm:$0x1]
  %v27 = vperm.slane %v25, 0
  %v33 = vunpack.c.l.b16 %v21
  %v34 = vunpack.c.l.b16 %v22
  %v35 = vunpack.c.l.b16 %v23
  %v36 = vunpack.c.l.b16 %v24
  %v37 = vpack.c.b16 %v34, %v33
  %v38 = vpack.c.b16 %v36, %v35
  %vm41 = vcmask 261120
  %v43 = vsel %vm41, %v20, 0
  %45 = vmatpush.bf16.msra.mxu0 0
  %46 = vmatpush.bf16.msra.mxu0 0
  %47 = vmatpush.bf16.msra.mxu0 0
  %48 = vmatpush.bf16.msra.mxu0 0
  %49 = vmatpush.bf16.msra.mxu0 0
  %50 = vmatpush.bf16.msra.mxu0 0
  %51 = vmatpush.bf16.msra.mxu0 %v38
  %52 = vmatpush.bf16.msra.mxu0 %v37
  %53 = vmatmul.bf16.gmra.mxu0 %v43
  %v54 = vpop.f32.mrf.mxu0
  %v55 = vadd.f32 %v27, %v54
  %v56 = vpop.f32.mrf.mxu0
  %v57 = vadd.f32 %v27, %v56
  %58 = vdwg.mxu0
  %59 = vst.msk [vmem:[%s3] sm:$0xff] %vm41, %v55
  %60 = vst.msk [vmem:[%s3 + $0x8] sm:$0xff] %vm41, %v57
  %63 = vrot.lane.b32.xlu0 %v55, 96
  %v64 = vpop.permute.xlu0 %63
  %65 = vrot.lane.b32.xlu0 %v57, 96
  %v66 = vpop.permute.xlu0 %65
  %69 = vst.msk [vmem:[%s4] sm:$0xff] %vm41, %v64
  %70 = vst.msk [vmem:[%s4 + $0x8] sm:$0xff] %vm41, %v66
  %71 = vrot.lane.b32.xlu0 %v55, 64
  %v72 = vpop.permute.xlu0 %71
  %73 = vrot.lane.b32.xlu0 %v57, 64
  %v74 = vpop.permute.xlu0 %73
  %77 = vst.msk [vmem:[%s5] sm:$0xff] %vm41, %v72
  %78 = vst.msk [vmem:[%s5 + $0x8] sm:$0xff] %vm41, %v74
  // Predicated region
  $region14: #{bert_forward.10} parent=0 // pred_check
    _
  $region15: #{bert_forward.10} parent=0 // pred_check_branch
    %80 = sbr.rel (0) target = $region17
  $region16: #{bert_forward.10} parent=0 // pred_region
    _
  $region17: #{bert_forward.10} parent=0 // pred_fallthru
    _
  // Predicated region
  $region18: #{bert_forward.10} parent=0 // pred_check
    _
  $region19: #{bert_forward.10} parent=0 // pred_check_branch
    %82 = sbr.rel (0) target = $region21
  $region20: #{bert_forward.10} parent=0 // pred_region
    _
  $region21: #{bert_forward.10} parent=0 // pred_fallthru
    _
  // Predicated region
  $region22: #{bert_forward.10} parent=0 // pred_check
    _
  $region23: #{bert_forward.10} parent=0 // pred_check_branch
    %84 = sbr.rel (0) target = $region25
  $region24: #{bert_forward.10} parent=0 // pred_region
    _
  $region25: #{bert_forward.10} parent=0 // pred_fallthru
    _
  // Predicated region
  $region26: #{bert_forward.10} parent=0 // pred_check
    _
  $region27: #{bert_forward.10} parent=0 // pred_check_branch
    %86 = sbr.rel (0) target = $region29
  $region28: #{bert_forward.10} parent=0 // pred_region
    _
  $region29: #{bert_forward.10} parent=0 // pred_fallthru
    _
  // Predicated region
  $region30: #{bert_forward.10} parent=0 // pred_check
    _
  $region31: #{bert_forward.10} parent=0 // pred_check_branch
    %88 = sbr.rel (0) target = $region33
  $region32: #{bert_forward.10} parent=0 // pred_region
    _
  $region33: #{bert_forward.10} parent=0 // pred_fallthru
    _
  // Predicated region
  $region34: #{bert_forward.10} parent=0 // pred_check
    _
  $region35: #{bert_forward.10} parent=0 // pred_check_branch
    %90 = sbr.rel (0) target = $region37
  $region36: #{bert_forward.10} parent=0 // pred_region
    _
  $region37: #{bert_forward.10} parent=0 // pred_fallthru
    _

// kernel: bert_forward.9
$region0: #{bert_forward.9}
  #allocation0 [shape = 'u32[]', space=smem, size = 0x4, offset = 0x4, fixed_abs, tag = 'smem constant byte address 0x4 - core index']
  #allocation1 [shape = 'u32[72,128]{1,0:T(1,128)}', space=vmem, size = 0x9000, scoped, tag = 'internal scratch']
  %s0 = inlined_call_operand.vmem [shape: f32[16,32], index: 0, kind: input, shape index: {}]
  %s1 = inlined_call_operand.vmem [shape: f32[1,32], index: 1, kind: input, shape index: {}]
  %s2 = inlined_call_operand.vmem [shape: f32[1,32], index: 2, kind: input, shape index: {}]
  %s3 = inlined_call_operand.vmem [shape: f32[16,32], index: 3, kind: output, shape index: {}]
  %s4 = sld [smem:[#allocation0]]
  $region22: #{bert_forward.9} parent=0
    _
  %s6 = ssub.s32 1, %s4
  %s7 = scalar_select 0, %s6, %s4
  // Predicated region
  $region2: #{bert_forward.9} parent=0 // pred_check
    _
  $region3: #{bert_forward.9} parent=0 // pred_check_branch
    %9 = sbr.rel (0) target = $region5
  $region4: #{bert_forward.9} parent=0 // pred_region
    _
  $region5: #{bert_forward.9} parent=0 // pred_fallthru
    _
  // Predicated region
  $region6: #{bert_forward.9} parent=0 // pred_check
    _
  $region7: #{bert_forward.9} parent=0 // pred_check_branch
    %11 = sbr.rel (0) target = $region9
  $region8: #{bert_forward.9} parent=0 // pred_region
    _
  $region9: #{bert_forward.9} parent=0 // pred_fallthru
    _
  // Predicated region
  $region10: #{bert_forward.9} parent=0 // pred_check
    _
  $region11: #{bert_forward.9} parent=0 // pred_check_branch
    %13 = sbr.rel (0) target = $region13
  $region12: #{bert_forward.9} parent=0 // pred_region
    _
  $region13: #{bert_forward.9} parent=0 // pred_fallthru
    _
  %v14 = vld [vmem:[%s0] sm:$0xff]
  %v15 = vld [vmem:[%s0 + $0x8] sm:$0xff]
  %v16 = vld [vmem:[%s1] sm:$0x1]
  %v17 = vld [vmem:[%s2] sm:$0x1]
  %vm18 = vcmask 261120
  %v19 = vsel %vm18, %v14, 0.0
  %20 = vadd.xlane.f32.xlu0 %v19
  %v21 = vpop.xlane.xlu0 %20
  %v22 = vsel %vm18, %v15, 0.0
  %23 = vadd.xlane.f32.xlu0 %v22
  %v24 = vpop.xlane.xlu0 %23
  %v25 = vrcp.pop 32.0
  %v26 = vmul.f32 32.0, %v25
  %v27 = vsub.f32 1.0, %v26
  %v28 = vmul.f32 %v25, %v27
  %v29 = vadd.f32 %v25, %v28
  %vm30 = vweird.f32 %v25
  %v31 = vsel %vm30, %v25, %v29
  %v32 = vmul.f32 %v21, %v31
  %v33 = vmul.f32 %v24, %v31
  %v34 = vsub.f32 %v14, %v32
  %v35 = vsub.f32 %v15, %v33
  %v36 = vmul.f32 %v34, %v34
  %v37 = vmul.f32 %v35, %v35
  %v38 = vsel %vm18, %v36, 0.0
  %39 = vadd.xlane.f32.xlu0 %v38
  %v40 = vpop.xlane.xlu0 %39
  %v41 = vsel %vm18, %v37, 0.0
  %42 = vadd.xlane.f32.xlu0 %v41
  %v43 = vpop.xlane.xlu0 %42
  %v44 = vmul.f32 %v40, %v31
  %v45 = vmul.f32 %v43, %v31
  %v46 = vadd.f32 %v44, 1e-12
  %v47 = vadd.f32 %v45, 1e-12
  %v48 = vrsqrt.pop %v46
  %v49 = vmul.f32 %v48, %v46
  %v50 = vmul.f32 %v49, %v48
  %v51 = vmul.f32 0.5, %v50
  %v52 = vsub.f32 1.5, %v51
  %v53 = vmul.f32 %v48, %v52
  %vm54 = vweird.f32 %v46
  %vm55 = vweird.f32 %v48
  %vm56 = vmor %vm54, %vm55
  %v57 = vsel %vm56, %v48, %v53
  %v58 = vrsqrt.pop %v47
  %v59 = vmul.f32 %v58, %v47
  %v60 = vmul.f32 %v59, %v58
  %v61 = vmul.f32 0.5, %v60
  %v62 = vsub.f32 1.5, %v61
  %v63 = vmul.f32 %v58, %v62
  %vm64 = vweird.f32 %v47
  %vm65 = vweird.f32 %v58
  %vm66 = vmor %vm64, %vm65
  %v67 = vsel %vm66, %v58, %v63
  %v68 = vmul.f32 %v34, %v57
  %v69 = vmul.f32 %v35, %v67
  %v71 = vperm.slane %v16, 0
  %v73 = vmul.f32 %v68, %v71
  %v74 = vmul.f32 %v69, %v71
  %v76 = vperm.slane %v17, 0
  %v78 = vadd.f32 %v73, %v76
  %v79 = vadd.f32 %v74, %v76
  %80 = vst.msk [vmem:[%s3] sm:$0xff] %vm18, %v78
  %81 = vst.msk [vmem:[%s3 + $0x8] sm:$0xff] %vm18, %v79
  // Predicated region
  $region14: #{bert_forward.9} parent=0 // pred_check
    _
  $region15: #{bert_forward.9} parent=0 // pred_check_branch
    %83 = sbr.rel (0) target = $region17
  $region16: #{bert_forward.9} parent=0 // pred_region
    _
  $region17: #{bert_forward.9} parent=0 // pred_fallthru
    _
  // Predicated region
  $region18: #{bert_forward.9} parent=0 // pred_check
    _
  $region19: #{bert_forward.9} parent=0 // pred_check_branch
    %85 = sbr.rel (0) target = $region21
  $region20: #{bert_forward.9} parent=0 // pred_region
    _
  $region21: #{bert_forward.9} parent=0 // pred_fallthru
    _

// kernel: bert_forward.12
$region0: #{bert_forward.12}
  #allocation0 [shape = 'u32[]', space=smem, size = 0x4, offset = 0x4, fixed_abs, tag = 'smem constant byte address 0x4 - core index']
  #allocation1 [shape = 'u32[72,128]{1,0:T(1,128)}', space=vmem, size = 0x9000, scoped, tag = 'internal scratch']
  %s0 = inlined_call_operand.vmem [shape: f32[16,32], index: 0, kind: input, shape index: {}]
  %s1 = inlined_call_operand.vmem [shape: f32[16,32], index: 1, kind: input, shape index: {}]
  %s2 = inlined_call_operand.vmem [shape: bf16[32,32], index: 2, kind: input, shape index: {}]
  %s3 = inlined_call_operand.vmem [shape: f32[1,32], index: 3, kind: input, shape index: {}]
  %s4 = inlined_call_operand.vmem [shape: f32[1,32], index: 4, kind: input, shape index: {}]
  %s5 = inlined_call_operand.vmem [shape: f32[1,32], index: 5, kind: input, shape index: {}]
  %s6 = inlined_call_operand.vmem [shape: f32[16,32], index: 6, kind: output, shape index: {}]
  %s7 = sld [smem:[#allocation0]]
  $region34: #{bert_forward.12} parent=0
    _
  %s9 = ssub.s32 1, %s7
  %s10 = scalar_select 0, %s9, %s7
  // Predicated region
  $region2: #{bert_forward.12} parent=0 // pred_check
    _
  $region3: #{bert_forward.12} parent=0 // pred_check_branch
    %12 = sbr.rel (0) target = $region5
  $region4: #{bert_forward.12} parent=0 // pred_region
    _
  $region5: #{bert_forward.12} parent=0 // pred_fallthru
    _
  // Predicated region
  $region6: #{bert_forward.12} parent=0 // pred_check
    _
  $region7: #{bert_forward.12} parent=0 // pred_check_branch
    %14 = sbr.rel (0) target = $region9
  $region8: #{bert_forward.12} parent=0 // pred_region
    _
  $region9: #{bert_forward.12} parent=0 // pred_fallthru
    _
  // Predicated region
  $region10: #{bert_forward.12} parent=0 // pred_check
    _
  $region11: #{bert_forward.12} parent=0 // pred_check_branch
    %16 = sbr.rel (0) target = $region13
  $region12: #{bert_forward.12} parent=0 // pred_region
    _
  $region13: #{bert_forward.12} parent=0 // pred_fallthru
    _
  // Predicated region
  $region14: #{bert_forward.12} parent=0 // pred_check
    _
  $region15: #{bert_forward.12} parent=0 // pred_check_branch
    %18 = sbr.rel (0) target = $region17
  $region16: #{bert_forward.12} parent=0 // pred_region
    _
  $region17: #{bert_forward.12} parent=0 // pred_fallthru
    _
  // Predicated region
  $region18: #{bert_forward.12} parent=0 // pred_check
    _
  $region19: #{bert_forward.12} parent=0 // pred_check_branch
    %20 = sbr.rel (0) target = $region21
  $region20: #{bert_forward.12} parent=0 // pred_region
    _
  $region21: #{bert_forward.12} parent=0 // pred_fallthru
    _
  // Predicated region
  $region22: #{bert_forward.12} parent=0 // pred_check
    _
  $region23: #{bert_forward.12} parent=0 // pred_check_branch
    %22 = sbr.rel (0) target = $region25
  $region24: #{bert_forward.12} parent=0 // pred_region
    _
  $region25: #{bert_forward.12} parent=0 // pred_fallthru
    _
  %v24 = vld [vmem:[%s0] sm:$0xff]
  %v25 = vld [vmem:[%s0 + $0x8] sm:$0xff]
  %v26 = vpack.c.bf16 %v25, %v24
  %v27 = vld [vmem:[%s2] sm:$0xf]
  %v28 = vld [vmem:[%s2 + $0x4] sm:$0xf]
  %v29 = vld [vmem:[%s2 + $0x8] sm:$0xf]
  %v30 = vld [vmem:[%s2 + $0xc] sm:$0xf]
  %v31 = vld [vmem:[%s3] sm:$0x1]
  %v33 = vperm.slane %v31, 0
  %v39 = vunpack.c.l.b16 %v27
  %v40 = vunpack.c.l.b16 %v28
  %v41 = vunpack.c.l.b16 %v29
  %v42 = vunpack.c.l.b16 %v30
  %v43 = vpack.c.b16 %v40, %v39
  %v44 = vpack.c.b16 %v42, %v41
  %vm47 = vcmask 261120
  %v49 = vsel %vm47, %v26, 0
  %51 = vmatpush.bf16.msra.mxu0 0
  %52 = vmatpush.bf16.msra.mxu0 0
  %53 = vmatpush.bf16.msra.mxu0 0
  %54 = vmatpush.bf16.msra.mxu0 0
  %55 = vmatpush.bf16.msra.mxu0 0
  %56 = vmatpush.bf16.msra.mxu0 0
  %57 = vmatpush.bf16.msra.mxu0 %v44
  %58 = vmatpush.bf16.msra.mxu0 %v43
  %59 = vmatmul.bf16.gmra.mxu0 %v49
  %v60 = vpop.f32.mrf.mxu0
  %v61 = vadd.f32 %v33, %v60
  %v62 = vpop.f32.mrf.mxu0
  %v63 = vadd.f32 %v33, %v62
  %64 = vdwg.mxu0
  %v65 = vld [vmem:[%s1] sm:$0xff]
  %v66 = vld [vmem:[%s1 + $0x8] sm:$0xff]
  %v67 = vadd.f32 %v61, %v65
  %v68 = vadd.f32 %v63, %v66
  %v69 = vld [vmem:[%s4] sm:$0x1]
  %v70 = vld [vmem:[%s5] sm:$0x1]
  %v71 = vsel %vm47, %v67, 0.0
  %72 = vadd.xlane.f32.xlu0 %v71
  %v73 = vpop.xlane.xlu0 %72
  %v74 = vsel %vm47, %v68, 0.0
  %75 = vadd.xlane.f32.xlu0 %v74
  %v76 = vpop.xlane.xlu0 %75
  %v77 = vrcp.pop 32.0
  %v78 = vmul.f32 32.0, %v77
  %v79 = vsub.f32 1.0, %v78
  %v80 = vmul.f32 %v77, %v79
  %v81 = vadd.f32 %v77, %v80
  %vm82 = vweird.f32 %v77
  %v83 = vsel %vm82, %v77, %v81
  %v84 = vmul.f32 %v73, %v83
  %v85 = vmul.f32 %v76, %v83
  %v86 = vsub.f32 %v67, %v84
  %v87 = vsub.f32 %v68, %v85
  %v88 = vmul.f32 %v86, %v86
  %v89 = vmul.f32 %v87, %v87
  %v90 = vsel %vm47, %v88, 0.0
  %91 = vadd.xlane.f32.xlu0 %v90
  %v92 = vpop.xlane.xlu0 %91
  %v93 = vsel %vm47, %v89, 0.0
  %94 = vadd.xlane.f32.xlu0 %v93
  %v95 = vpop.xlane.xlu0 %94
  %v96 = vmul.f32 %v92, %v83
  %v97 = vmul.f32 %v95, %v83
  %v98 = vadd.f32 %v96, 1e-12
  %v99 = vadd.f32 %v97, 1e-12
  %v100 = vrsqrt.pop %v98
  %v101 = vmul.f32 %v100, %v98
  %v102 = vmul.f32 %v101, %v100
  %v103 = vmul.f32 0.5, %v102
  %v104 = vsub.f32 1.5, %v103
  %v105 = vmul.f32 %v100, %v104
  %vm106 = vweird.f32 %v98
  %vm107 = vweird.f32 %v100
  %vm108 = vmor %vm106, %vm107
  %v109 = vsel %vm108, %v100, %v105
  %v110 = vrsqrt.pop %v99
  %v111 = vmul.f32 %v110, %v99
  %v112 = vmul.f32 %v111, %v110
  %v113 = vmul.f32 0.5, %v112
  %v114 = vsub.f32 1.5, %v113
  %v115 = vmul.f32 %v110, %v114
  %vm116 = vweird.f32 %v99
  %vm117 = vweird.f32 %v110
  %vm118 = vmor %vm116, %vm117
  %v119 = vsel %vm118, %v110, %v115
  %v120 = vmul.f32 %v86, %v109
  %v121 = vmul.f32 %v87, %v119
  %v123 = vperm.slane %v69, 0
  %v125 = vmul.f32 %v120, %v123
  %v126 = vmul.f32 %v121, %v123
  %v128 = vperm.slane %v70, 0
  %v130 = vadd.f32 %v125, %v128
  %v131 = vadd.f32 %v126, %v128
  %132 = vst.msk [vmem:[%s6] sm:$0xff] %vm47, %v130
  %133 = vst.msk [vmem:[%s6 + $0x8] sm:$0xff] %vm47, %v131
  // Predicated region
  $region26: #{bert_forward.12} parent=0 // pred_check
    _
  $region27: #{bert_forward.12} parent=0 // pred_check_branch
    %135 = sbr.rel (0) target = $region29
  $region28: #{bert_forward.12} parent=0 // pred_region
    _
  $region29: #{bert_forward.12} parent=0 // pred_fallthru
    _
  // Predicated region
  $region30: #{bert_forward.12} parent=0 // pred_check
    _
  $region31: #{bert_forward.12} parent=0 // pred_check_branch
    %137 = sbr.rel (0) target = $region33
  $region32: #{bert_forward.12} parent=0 // pred_region
    _
  $region33: #{bert_forward.12} parent=0 // pred_fallthru
    _

// kernel: bert_forward.11
$region0: #{bert_forward.11}
  #allocation0 [shape = 'u32[]', space=smem, size = 0x4, offset = 0x4, fixed_abs, tag = 'smem constant byte address 0x4 - core index']
  #allocation1 [shape = 'u32[72,128]{1,0:T(1,128)}', space=vmem, size = 0x9000, scoped, tag = 'internal scratch']
  #allocation2 [shape = 'f32[8,32]{1,0:T(8,128)}', space=vmem, size = 0x1000, scoped, tag = 'scratch operand']
  %s0 = inlined_call_operand.vmem [shape: f32[2,8,32], index: 0, kind: input, shape index: {}]
  %s1 = inlined_call_operand.vmem [shape: f32[2,8,32], index: 1, kind: input, shape index: {}]
  %s2 = inlined_call_operand.vmem [shape: f32[2,8,32], index: 2, kind: input, shape index: {}]
  %s3 = inlined_call_operand.vmem [shape: f32[2,1,8], index: 3, kind: input, shape index: {}]
  %s4 = inlined_call_operand.vmem [shape: f32[2,8,32], index: 4, kind: output, shape index: {}]
  %s5 = sld [smem:[#allocation0]]
  $region49: #{bert_forward.11} parent=0
    _
  %s7 = ssub.s32 1, %s5
  %s8 = scalar_select 0, %s7, %s5
  loop: start=0, step=1, limit=4
  $region2: #{bert_forward.11} parent=0 // loop_pre_header
    _
  $region3: #{bert_forward.11} parent=0 // loop_header
    %s10 = sphi 0, %s14
    %p11 = scmp.ge.s32.totalorder %s10, 4
    %s17 = sphi 0, %s29
    %s18 = sphi 0, %s25
    %s19 = sphi 0, %s17
    %s20 = sphi 0, %s18
    %s21 = sphi 0, %s19
    %s22 = sphi 0, %s20
    %s34 = sphi 0, %s36
    %s37 = sphi 0, %s34
    %s38 = sphi 0, %s37
    %s54 = sphi 0, %s38
    %s60 = sphi 0, %s62
    %s63 = sphi 0, %s60
    %s64 = sphi 0, %s63
    %s80 = sphi 0, %s64
    %s86 = sphi 0, %s88
    %s89 = sphi 0, %s86
    %s90 = sphi 0, %s89
    %s106 = sphi 0, %s90
    %s112 = sphi 0, %s114
    %s115 = sphi 0, %s112
    %s116 = sphi 0, %s115
    %s132 = sphi 0, %s116
    %s140 = sphi 0, %s142
    %s143 = sphi 0, %s140
    %s144 = sphi 0, %s143
    %s160 = sphi 0, %s144
  $region4: #{bert_forward.11} parent=0 // loop_header_branch
    %13 = sbr.rel (%p11) target = $region8
  $region5: #{bert_forward.11} parent=0 // loop_body
    %s15 = ssub.s32 %s10, 1
    %s16 = ssub.s32 %s10, 2
    %s23 = sadd.s32 1, %s18
    %p24 = scmp.ge.s32.totalorder %s23, 1
    %s25 = scalar_select %p24, 0, %s23
    %s26 = sadd.s32 1, %s17
    %s27 = scalar_select %p24, %s26, %s17
    %p28 = scmp.ge.s32.totalorder %s27, 2
    %s29 = scalar_select %p28, 0, %s27
    %s30 = ssub.s32 %s17, %s29
    %s31 = ssub.s32 %s18, %s25
    %s32 = sor.u32 %s30, %s31
    %p33 = scmp.eq.s32.totalorder %s32, 0
    %s35 = sadd.s32 %s34, 1
    %s36 = scalar_select %p33, %s34, %s35
    %p39 = pneg %p33
    %p40 = scmp.eq.s32.totalorder %s10, 1
    %p41 = por %p39, %p40
    %p42 = scmp.ne.s32.totalorder %s34, %s37
    %p43 = scmp.eq.s32.totalorder %s10, 0
    %p44 = por %p42, %p43
    %p45 = scmp.ne.s32.totalorder %s34, %s37
    %p46 = scmp.eq.s32.totalorder %s15, 1
    %p47 = por %p45, %p46
    %p48 = scmp.ne.s32.totalorder %s37, %s38
    %p49 = scmp.eq.s32.totalorder %s15, 0
    %p50 = por %p48, %p49
    %p51 = scmp.ne.s32.totalorder %s37, %s38
    %p52 = scmp.eq.s32.totalorder %s16, 1
    %p53 = por %p51, %p52
    %p55 = scmp.ne.s32.totalorder %s38, %s54
    %p56 = scmp.eq.s32.totalorder %s16, 0
    %p57 = por %p55, %p56
    %s58 = ssub.s32 %s17, %s29
    %p59 = scmp.eq.s32.totalorder %s58, 0
    %s61 = sadd.s32 %s60, 1
    %s62 = scalar_select %p59, %s60, %s61
    %p65 = pneg %p59
    %p66 = scmp.eq.s32.totalorder %s10, 1
    %p67 = por %p65, %p66
    %p68 = scmp.ne.s32.totalorder %s60, %s63
    %p69 = scmp.eq.s32.totalorder %s10, 0
    %p70 = por %p68, %p69
    %p71 = scmp.ne.s32.totalorder %s60, %s63
    %p72 = scmp.eq.s32.totalorder %s15, 1
    %p73 = por %p71, %p72
    %p74 = scmp.ne.s32.totalorder %s63, %s64
    %p75 = scmp.eq.s32.totalorder %s15, 0
    %p76 = por %p74, %p75
    %p77 = scmp.ne.s32.totalorder %s63, %s64
    %p78 = scmp.eq.s32.totalorder %s16, 1
    %p79 = por %p77, %p78
    %p81 = scmp.ne.s32.totalorder %s64, %s80
    %p82 = scmp.eq.s32.totalorder %s16, 0
    %p83 = por %p81, %p82
    %s84 = ssub.s32 %s17, %s29
    %p85 = scmp.eq.s32.totalorder %s84, 0
    %s87 = sadd.s32 %s86, 1
    %s88 = scalar_select %p85, %s86, %s87
    %p91 = pneg %p85
    %p92 = scmp.eq.s32.totalorder %s10, 1
    %p93 = por %p91, %p92
    %p94 = scmp.ne.s32.totalorder %s86, %s89
    %p95 = scmp.eq.s32.totalorder %s10, 0
    %p96 = por %p94, %p95
    %p97 = scmp.ne.s32.totalorder %s86, %s89
    %p98 = scmp.eq.s32.totalorder %s15, 1
    %p99 = por %p97, %p98
    %p100 = scmp.ne.s32.totalorder %s89, %s90
    %p101 = scmp.eq.s32.totalorder %s15, 0
    %p102 = por %p100, %p101
    %p103 = scmp.ne.s32.totalorder %s89, %s90
    %p104 = scmp.eq.s32.totalorder %s16, 1
    %p105 = por %p103, %p104
    %p107 = scmp.ne.s32.totalorder %s90, %s106
    %p108 = scmp.eq.s32.totalorder %s16, 0
    %p109 = por %p107, %p108
    %s110 = ssub.s32 %s17, %s29
    %p111 = scmp.eq.s32.totalorder %s110, 0
    %s113 = sadd.s32 %s112, 1
    %s114 = scalar_select %p111, %s112, %s113
    %p117 = pneg %p111
    %p118 = scmp.eq.s32.totalorder %s10, 1
    %p119 = por %p117, %p118
    %p120 = scmp.ne.s32.totalorder %s112, %s115
    %p121 = scmp.eq.s32.totalorder %s10, 0
    %p122 = por %p120, %p121
    %p123 = scmp.ne.s32.totalorder %s112, %s115
    %p124 = scmp.eq.s32.totalorder %s15, 1
    %p125 = por %p123, %p124
    %p126 = scmp.ne.s32.totalorder %s115, %s116
    %p127 = scmp.eq.s32.totalorder %s15, 0
    %p128 = por %p126, %p127
    %p129 = scmp.ne.s32.totalorder %s115, %s116
    %p130 = scmp.eq.s32.totalorder %s16, 1
    %p131 = por %p129, %p130
    %p133 = scmp.ne.s32.totalorder %s116, %s132
    %p134 = scmp.eq.s32.totalorder %s16, 0
    %p135 = por %p133, %p134
    %s136 = ssub.s32 %s17, %s29
    %s137 = ssub.s32 %s18, %s25
    %s138 = sor.u32 %s136, %s137
    %p139 = scmp.eq.s32.totalorder %s138, 0
    %s141 = sadd.s32 %s140, 1
    %s142 = scalar_select %p139, %s140, %s141
    %p145 = pneg %p139
    %p146 = scmp.eq.s32.totalorder %s10, 1
    %p147 = por %p145, %p146
    %p148 = scmp.ne.s32.totalorder %s140, %s143
    %p149 = scmp.eq.s32.totalorder %s10, 0
    %p150 = por %p148, %p149
    %p151 = scmp.ne.s32.totalorder %s140, %s143
    %p152 = scmp.eq.s32.totalorder %s15, 1
    %p153 = por %p151, %p152
    %p154 = scmp.ne.s32.totalorder %s143, %s144
    %p155 = scmp.eq.s32.totalorder %s15, 0
    %p156 = por %p154, %p155
    %p157 = scmp.ne.s32.totalorder %s143, %s144
    %p158 = scmp.eq.s32.totalorder %s16, 1
    %p159 = por %p157, %p158
    %p161 = scmp.ne.s32.totalorder %s144, %s160
    %p162 = scmp.eq.s32.totalorder %s16, 0
    %p163 = por %p161, %p162
    %p164 = scmp.le.s32.totalorder 1, %s10
    %p165 = scmp.lt.s32.totalorder %s10, 3
    %p166 = pnand %p164, %p165
    %p167 = pneg %p166
    // Predicated region
    $region9: #{bert_forward.11} parent=5 // pred_check
      _
    $region10: #{bert_forward.11} parent=5 // pred_check_branch
      %169 = sbr.rel (%p166) target = $region12
    $region11: #{bert_forward.11} parent=5 // pred_region
      %s170 = ssub.s32 %s10, 1
    $region12: #{bert_forward.11} parent=5 // pred_fallthru
      _
    %p171 = scmp.lt.s32.totalorder %s10, 2
    // Predicated region
    $region13: #{bert_forward.11} parent=5 // pred_check
      %p172 = pneg %p171
    $region14: #{bert_forward.11} parent=5 // pred_check_branch
      %174 = sbr.rel (%p172) target = $region16
    $region15: #{bert_forward.11} parent=5 // pred_region
      // Predicated region
      $region17: #{bert_forward.11} parent=15 // pred_check
        %p175 = pneg %p44
      $region18: #{bert_forward.11} parent=15 // pred_check_branch
        %177 = sbr.rel (%p175) target = $region20
      $region19: #{bert_forward.11} parent=15 // pred_region
        %p178 = scmp.lt.s32.totalorder %s17, 1
        %s179 = scalar_select %p178, %s17, 1
        %p180 = scmp.lt.s32.totalorder %s18, 0
        %s181 = scalar_select %p180, %s18, 0
        %s182 = sadd.s32 %s181, %s179
        %s183 = smul.addr %s182, 8
        %s184 = scalar_lea.vmem %s0, %s183
      $region20: #{bert_forward.11} parent=15 // pred_fallthru
        _
      // Predicated region
      $region21: #{bert_forward.11} parent=15 // pred_check
        %p185 = pneg %p70
      $region22: #{bert_forward.11} parent=15 // pred_check_branch
        %187 = sbr.rel (%p185) target = $region24
      $region23: #{bert_forward.11} parent=15 // pred_region
        %p188 = scmp.lt.s32.totalorder %s17, 1
        %s189 = scalar_select %p188, %s17, 1
        %s190 = smul.addr %s189, 8
        %s191 = scalar_lea.vmem %s1, %s190
      $region24: #{bert_forward.11} parent=15 // pred_fallthru
        _
      // Predicated region
      $region25: #{bert_forward.11} parent=15 // pred_check
        %p192 = pneg %p96
      $region26: #{bert_forward.11} parent=15 // pred_check_branch
        %194 = sbr.rel (%p192) target = $region28
      $region27: #{bert_forward.11} parent=15 // pred_region
        %p195 = scmp.lt.s32.totalorder %s17, 1
        %s196 = scalar_select %p195, %s17, 1
        %s197 = smul.addr %s196, 8
        %s198 = scalar_lea.vmem %s2, %s197
      $region28: #{bert_forward.11} parent=15 // pred_fallthru
        _
      // Predicated region
      $region29: #{bert_forward.11} parent=15 // pred_check
        %p199 = pneg %p122
      $region30: #{bert_forward.11} parent=15 // pred_check_branch
        %201 = sbr.rel (%p199) target = $region32
      $region31: #{bert_forward.11} parent=15 // pred_region
        %p202 = scmp.lt.s32.totalorder %s17, 1
        %s203 = scalar_select %p202, %s17, 1
        %s204 = scalar_lea.vmem %s3, %s203
      $region32: #{bert_forward.11} parent=15 // pred_fallthru
        _
    $region16: #{bert_forward.11} parent=5 // pred_fallthru
      _
    %p205 = scmp.le.s32.totalorder 1, %s10
    %p206 = scmp.lt.s32.totalorder %s10, 3
    %p207 = pnand %p205, %p206
    %p208 = pneg %p207
    // Predicated region
    $region33: #{bert_forward.11} parent=5 // pred_check
      _
    $region34: #{bert_forward.11} parent=5 // pred_check_branch
      %210 = sbr.rel (%p207) target = $region36
    $region35: #{bert_forward.11} parent=5 // pred_region
      %s211 = ssub.s32 %s10, 1
      %p212 = scmp.lt.s32.totalorder %s19, 1
      %s213 = scalar_select %p212, %s19, 1
      %p214 = scmp.lt.s32.totalorder %s20, 0
      %s215 = scalar_select %p214, %s20, 0
      %s216 = sadd.s32 %s215, %s213
      %s217 = smul.addr %s216, 8
      %s218 = scalar_lea.vmem %s0, %s217
      %p219 = pneg %p50
      %p220 = pneg %p47
      %p221 = scmp.lt.s32.totalorder %s19, 1
      %s222 = scalar_select %p221, %s19, 1
      %s223 = smul.addr %s222, 8
      %s224 = scalar_lea.vmem %s1, %s223
      %p225 = pneg %p76
      %p226 = pneg %p73
      %p227 = scmp.lt.s32.totalorder %s19, 1
      %s228 = scalar_select %p227, %s19, 1
      %s229 = smul.addr %s228, 8
      %s230 = scalar_lea.vmem %s2, %s229
      %p231 = pneg %p102
      %p232 = pneg %p99
      %p233 = scmp.lt.s32.totalorder %s19, 1
      %s234 = scalar_select %p233, %s19, 1
      %s235 = scalar_lea.vmem %s3, %s234
      %p236 = pneg %p128
      %p237 = pneg %p125
      %p238 = pneg %p156
      %p239 = pneg %p153
      %p240 = scmp.lt.s32.totalorder %s19, 1
      %s241 = scalar_select %p240, %s19, 1
      %p242 = scmp.lt.s32.totalorder %s20, 0
      %s243 = scalar_select %p242, %s20, 0
      %s244 = sadd.s32 %s243, %s241
      %s245 = smul.addr %s244, 8
      %s246 = scalar_lea.vmem %s4, %s245
      %p247 = scmp.lt.s32.totalorder %s19, 1
      %s248 = scalar_select %p247, %s19, 1
      %p249 = scmp.lt.s32.totalorder %s20, 0
      %s250 = scalar_select %p249, %s20, 0
      %s251 = sadd.s32 %s250, %s248
      %s252 = smul.addr %s251, 8
      %s253 = scalar_lea.vmem %s0, %s252
      %p254 = scmp.lt.s32.totalorder %s19, 1
      %s255 = scalar_select %p254, %s19, 1
      %s256 = smul.addr %s255, 8
      %s257 = scalar_lea.vmem %s1, %s256
      %p258 = scmp.lt.s32.totalorder %s19, 1
      %s259 = scalar_select %p258, %s19, 1
      %s260 = smul.addr %s259, 8
      %s261 = scalar_lea.vmem %s2, %s260
      %p262 = scmp.lt.s32.totalorder %s19, 1
      %s263 = scalar_select %p262, %s19, 1
      %s264 = scalar_lea.vmem %s3, %s263
      %p265 = scmp.lt.s32.totalorder %s19, 1
      %s266 = scalar_select %p265, %s19, 1
      %p267 = scmp.lt.s32.totalorder %s20, 0
      %s268 = scalar_select %p267, %s20, 0
      %s269 = sadd.s32 %s268, %s266
      %s270 = smul.addr %s269, 8
      %s271 = scalar_lea.vmem %s4, %s270
      %v273 = vld [vmem:[%s253] sm:$0xff]
      %v274 = vmul.f32 %v273, 0.25
      %v275 = vpack.c.bf16 %v274, %v274
      %v276 = vld [vmem:[%s257] sm:$0xff]
      %v277 = vpack.c.bf16 %v276, %v276
      %v278 = vld [vmem:[%s261] sm:$0xff]
      %v279 = vpack.c.bf16 %v278, %v278
      %v280 = vld [vmem:[%s264] sm:$0x1]
      %v282 = vperm.slane %v280, 0
      %vm284 = vcmask 130048
      %v286 = vsel %vm284, %v275, 0
      %v289 = vsel %vm284, %v277, 0
      %291 = vmatpush.bf16.xpose.msra.mxu0 0
      %292 = vmatpush.bf16.xpose.msra.mxu0 0
      %293 = vmatpush.bf16.xpose.msra.mxu0 0
      %294 = vmatpush.bf16.xpose.msra.mxu0 0
      %295 = vmatpush.bf16.xpose.msra.mxu0 0
      %296 = vmatpush.bf16.xpose.msra.mxu0 0
      %297 = vmatpush.bf16.xpose.msra.mxu0 0
      %298 = vmatpush.bf16.xpose.msra.mxu0 %v289
      %299 = vmatmul.bf16.gmra.mxu0 %v286
      %v300 = vpop.f32.mrf.mxu0
      %v301 = vadd.f32 %v282, %v300
      %v302 = vpop.f32.mrf.mxu0
      %303 = vdwg.mxu0
      %vm304 = vcmask 64512
      %v305 = vsel %vm304, %v301, -inf
      %306 = vmax.xlane.f32.xlu0 %v305
      %v307 = vpop.xlane.xlu0 %306
      %v308 = vsub.f32 %v301, %v307
      %v309 = vmul.f32 %v308, 1.442695
      %v310 = vpow.pop %v309
      %v311 = vsel %vm304, %v310, 0.0
      %312 = vadd.xlane.f32.xlu0 %v311
      %v313 = vpop.xlane.xlu0 %312
      %v314 = vpack.c.bf16 %v310, %v310
      %v316 = vsel %vm304, %v314, 0
      %vm318 = vcmask 1043456
      %v320 = vsel %vm318, %v279, 0
      %322 = vmatpush.bf16.msra.mxu0 0
      %323 = vmatpush.bf16.msra.mxu0 0
      %324 = vmatpush.bf16.msra.mxu0 0
      %325 = vmatpush.bf16.msra.mxu0 0
      %326 = vmatpush.bf16.msra.mxu0 0
      %327 = vmatpush.bf16.msra.mxu0 0
      %328 = vmatpush.bf16.msra.mxu0 0
      %329 = vmatpush.bf16.msra.mxu0 %v320
      %330 = vmatmul.bf16.gmra.mxu0 %v316
      %v331 = vpop.f32.mrf.mxu0
      %v332 = vadd.f32 0.0, %v331
      %v333 = vpop.f32.mrf.mxu0
      %334 = vdwg.mxu0
      %v335 = vrcp.pop %v313
      %v336 = vmul.f32 %v313, %v335
      %v337 = vsub.f32 1.0, %v336
      %v338 = vmul.f32 %v335, %v337
      %v339 = vadd.f32 %v335, %v338
      %vm340 = vweird.f32 %v313
      %vm341 = vweird.f32 %v335
      %vm342 = vmor %vm340, %vm341
      %v343 = vsel %vm342, %v335, %v339
      %v344 = vand.u32 2147483647, %v313
      %vm345 = vcmp.eq.f32.partialorder %v344, 8.507059e+37
      %v346 = vand.u32 %v313, 2147483648
      %v347 = vor.u32 1.1754944e-38, %v346
      %v348 = vsel %vm345, %v347, %v343
      %v349 = vmul.f32 1.0, %v348
      %v350 = vmul.f32 %v332, %v349
      %351 = vst.msk [vmem:[#allocation2] sm:$0xff] %vm284, %v350
      %v353 = vunpack.c.l.b16 %v275
      %v354 = vpack.c.b16 %v353, %v353
      %355 = vrot.lane.b32.xlu0 %v354, 112
      %v356 = vpop.permute.xlu0 %355
      %v358 = vunpack.c.l.b16 %v277
      %v359 = vpack.c.b16 %v358, %v358
      %360 = vrot.lane.b32.xlu0 %v359, 112
      %v361 = vpop.permute.xlu0 %360
      %v363 = vsel %vm284, %v356, 0
      %v366 = vsel %vm284, %v361, 0
      %368 = vmatpush.bf16.xpose.msra.mxu0 0
      %369 = vmatpush.bf16.xpose.msra.mxu0 0
      %370 = vmatpush.bf16.xpose.msra.mxu0 0
      %371 = vmatpush.bf16.xpose.msra.mxu0 0
      %372 = vmatpush.bf16.xpose.msra.mxu0 0
      %373 = vmatpush.bf16.xpose.msra.mxu0 0
      %374 = vmatpush.bf16.xpose.msra.mxu0 0
      %375 = vmatpush.bf16.xpose.msra.mxu0 %v366
      %376 = vmatmul.bf16.gmra.mxu0 %v363
      %v377 = vpop.f32.mrf.mxu0
      %v378 = vadd.f32 %v282, %v377
      %v379 = vpop.f32.mrf.mxu0
      %380 = vdwg.mxu0
      %v381 = vsel %vm304, %v378, -inf
      %382 = vmax.xlane.f32.xlu0 %v381
      %v383 = vpop.xlane.xlu0 %382
      %v384 = vsub.f32 %v378, %v383
      %v385 = vmul.f32 %v384, 1.442695
      %v386 = vpow.pop %v385
      %v387 = vsel %vm304, %v386, 0.0
      %388 = vadd.xlane.f32.xlu0 %v387
      %v389 = vpop.xlane.xlu0 %388
      %v390 = vpack.c.bf16 %v386, %v386
      %v392 = vunpack.c.l.b16 %v279
      %v393 = vpack.c.b16 %v392, %v392
      %394 = vrot.lane.b32.xlu0 %v393, 112
      %v395 = vpop.permute.xlu0 %394
      %v397 = vsel %vm304, %v390, 0
      %v400 = vsel %vm318, %v395, 0
      %402 = vmatpush.bf16.msra.mxu0 0
      %403 = vmatpush.bf16.msra.mxu0 0
      %404 = vmatpush.bf16.msra.mxu0 0
      %405 = vmatpush.bf16.msra.mxu0 0
      %406 = vmatpush.bf16.msra.mxu0 0
      %407 = vmatpush.bf16.msra.mxu0 0
      %408 = vmatpush.bf16.msra.mxu0 0
      %409 = vmatpush.bf16.msra.mxu0 %v400
      %410 = vmatmul.bf16.gmra.mxu0 %v397
      %v411 = vpop.f32.mrf.mxu0
      %v412 = vadd.f32 0.0, %v411
      %v413 = vpop.f32.mrf.mxu0
      %414 = vdwg.mxu0
      %v415 = vrcp.pop %v389
      %v416 = vmul.f32 %v389, %v415
      %v417 = vsub.f32 1.0, %v416
      %v418 = vmul.f32 %v415, %v417
      %v419 = vadd.f32 %v415, %v418
      %vm420 = vweird.f32 %v389
      %vm421 = vweird.f32 %v415
      %vm422 = vmor %vm420, %vm421
      %v423 = vsel %vm422, %v415, %v419
      %v424 = vand.u32 2147483647, %v389
      %vm425 = vcmp.eq.f32.partialorder %v424, 8.507059e+37
      %v426 = vand.u32 %v389, 2147483648
      %v427 = vor.u32 1.1754944e-38, %v426
      %v428 = vsel %vm425, %v427, %v423
      %v429 = vmul.f32 1.0, %v428
      %v430 = vmul.f32 %v412, %v429
      %432 = vrot.lane.b32.xlu0 %v430, 16
      %v433 = vpop.permute.xlu0 %432
      %vm435 = vcmask 261248
      %436 = vst.msk [vmem:[#allocation2] sm:$0xff] %vm435, %v433
      %v437 = vld [vmem:[#allocation2] sm:$0xff]
      %vm438 = vcmask 261120
      %439 = vst.msk [vmem:[%s271] sm:$0xff] %vm438, %v437
      %p440 = scmp.lt.s32.totalorder %s19, 1
      %s441 = scalar_select %p440, %s19, 1
      %p442 = scmp.lt.s32.totalorder %s20, 0
      %s443 = scalar_select %p442, %s20, 0
      %s444 = sadd.s32 %s443, %s441
      %s445 = smul.addr %s444, 8
      %s446 = scalar_lea.vmem %s4, %s445
      // Predicated region
      $region37: #{bert_forward.11} parent=35 // pred_check
        %p447 = pneg %p153
      $region38: #{bert_forward.11} parent=35 // pred_check_branch
        %449 = sbr.rel (%p447) target = $region40
      $region39: #{bert_forward.11} parent=35 // pred_region
        _
      $region40: #{bert_forward.11} parent=35 // pred_fallthru
        _
    $region36: #{bert_forward.11} parent=5 // pred_fallthru
      _
    %p450 = scmp.le.s32.totalorder 2, %s10
    // Predicated region
    $region41: #{bert_forward.11} parent=5 // pred_check
      %p451 = pneg %p450
    $region42: #{bert_forward.11} parent=5 // pred_check_branch
      %453 = sbr.rel (%p451) target = $region44
    $region43: #{bert_forward.11} parent=5 // pred_region
      %s454 = ssub.s32 %s10, 2
      // Predicated region
      $region45: #{bert_forward.11} parent=43 // pred_check
        %p455 = pneg %p159
      $region46: #{bert_forward.11} parent=43 // pred_check_branch
        %457 = sbr.rel (%p455) target = $region48
      $region47: #{bert_forward.11} parent=43 // pred_region
        %p458 = scmp.lt.s32.totalorder %s21, 1
        %s459 = scalar_select %p458, %s21, 1
        %p460 = scmp.lt.s32.totalorder %s22, 0
        %s461 = scalar_select %p460, %s22, 0
        %s462 = sadd.s32 %s461, %s459
        %s463 = smul.addr %s462, 8
        %s464 = scalar_lea.vmem %s4, %s463
      $region48: #{bert_forward.11} parent=43 // pred_fallthru
        _
    $region44: #{bert_forward.11} parent=5 // pred_fallthru
      _
  $region6: #{bert_forward.11} parent=0 // loop_footer
    %s14 = sadd.s32 1, %s10
  $region7: #{bert_forward.11} parent=0 // loop_footer_branch
    %9 = sbr.rel target = $region3
  $region8: #{bert_forward.11} parent=0 // loop_exit
    _

// kernel: bert_forward.13
$region0: #{bert_forward.13}
  #allocation0 [shape = 'u32[]', space=smem, size = 0x4, offset = 0x4, fixed_abs, tag = 'smem constant byte address 0x4 - core index']
  #allocation1 [shape = 'u32[72,128]{1,0:T(1,128)}', space=vmem, size = 0x9000, scoped, tag = 'internal scratch']
  %s0 = inlined_call_operand.vmem [shape: f32[16,32], index: 0, kind: input, shape index: {}]
  %s1 = inlined_call_operand.vmem [shape: bf16[32,64], index: 1, kind: input, shape index: {}]
  %s2 = inlined_call_operand.vmem [shape: f32[1,64], index: 2, kind: input, shape index: {}]
  %s3 = inlined_call_operand.vmem [shape: bf16[64,32], index: 3, kind: input, shape index: {}]
  %s4 = inlined_call_operand.vmem [shape: f32[1,32], index: 4, kind: input, shape index: {}]
  %s5 = inlined_call_operand.vmem [shape: f32[1,32], index: 5, kind: input, shape index: {}]
  %s6 = inlined_call_operand.vmem [shape: f32[1,32], index: 6, kind: input, shape index: {}]
  %s7 = inlined_call_operand.vmem [shape: f32[16,32], index: 7, kind: output, shape index: {}]
  %s8 = sld [smem:[#allocation0]]
  $region38: #{bert_forward.13} parent=0
    _
  %s10 = ssub.s32 1, %s8
  %s11 = scalar_select 0, %s10, %s8
  // Predicated region
  $region2: #{bert_forward.13} parent=0 // pred_check
    _
  $region3: #{bert_forward.13} parent=0 // pred_check_branch
    %13 = sbr.rel (0) target = $region5
  $region4: #{bert_forward.13} parent=0 // pred_region
    _
  $region5: #{bert_forward.13} parent=0 // pred_fallthru
    _
  // Predicated region
  $region6: #{bert_forward.13} parent=0 // pred_check
    _
  $region7: #{bert_forward.13} parent=0 // pred_check_branch
    %15 = sbr.rel (0) target = $region9
  $region8: #{bert_forward.13} parent=0 // pred_region
    _
  $region9: #{bert_forward.13} parent=0 // pred_fallthru
    _
  // Predicated region
  $region10: #{bert_forward.13} parent=0 // pred_check
    _
  $region11: #{bert_forward.13} parent=0 // pred_check_branch
    %17 = sbr.rel (0) target = $region13
  $region12: #{bert_forward.13} parent=0 // pred_region
    _
  $region13: #{bert_forward.13} parent=0 // pred_fallthru
    _
  // Predicated region
  $region14: #{bert_forward.13} parent=0 // pred_check
    _
  $region15: #{bert_forward.13} parent=0 // pred_check_branch
    %19 = sbr.rel (0) target = $region17
  $region16: #{bert_forward.13} parent=0 // pred_region
    _
  $region17: #{bert_forward.13} parent=0 // pred_fallthru
    _
  // Predicated region
  $region18: #{bert_forward.13} parent=0 // pred_check
    _
  $region19: #{bert_forward.13} parent=0 // pred_check_branch
    %21 = sbr.rel (0) target = $region21
  $region20: #{bert_forward.13} parent=0 // pred_region
    _
  $region21: #{bert_forward.13} parent=0 // pred_fallthru
    _
  // Predicated region
  $region22: #{bert_forward.13} parent=0 // pred_check
    _
  $region23: #{bert_forward.13} parent=0 // pred_check_branch
    %23 = sbr.rel (0) target = $region25
  $region24: #{bert_forward.13} parent=0 // pred_region
    _
  $region25: #{bert_forward.13} parent=0 // pred_fallthru
    _
  // Predicated region
  $region26: #{bert_forward.13} parent=0 // pred_check
    _
  $region27: #{bert_forward.13} parent=0 // pred_check_branch
    %25 = sbr.rel (0) target = $region29
  $region28: #{bert_forward.13} parent=0 // pred_region
    _
  $region29: #{bert_forward.13} parent=0 // pred_fallthru
    _
  %v27 = vld [vmem:[%s0] sm:$0xff]
  %v28 = vld [vmem:[%s0 + $0x8] sm:$0xff]
  %v29 = vpack.c.bf16 %v28, %v27
  %v30 = vld [vmem:[%s1] sm:$0xf]
  %v31 = vld [vmem:[%s1 + $0x4] sm:$0xf]
  %v32 = vld [vmem:[%s1 + $0x8] sm:$0xf]
  %v33 = vld [vmem:[%s1 + $0xc] sm:$0xf]
  %v34 = vld [vmem:[%s2] sm:$0x1]
  %v36 = vperm.slane %v34, 0
  %v42 = vunpack.c.l.b16 %v30
  %v43 = vunpack.c.l.b16 %v31
  %v44 = vunpack.c.l.b16 %v32
  %v45 = vunpack.c.l.b16 %v33
  %v46 = vpack.c.b16 %v43, %v42
  %v47 = vpack.c.b16 %v45, %v44
  %vm50 = vcmask 261120
  %v52 = vsel %vm50, %v29, 0
  %54 = vmatpush.bf16.msra.mxu0 0
  %55 = vmatpush.bf16.msra.mxu0 0
  %56 = vmatpush.bf16.msra.mxu0 0
  %57 = vmatpush.bf16.msra.mxu0 0
  %58 = vmatpush.bf16.msra.mxu0 0
  %59 = vmatpush.bf16.msra.mxu0 0
  %60 = vmatpush.bf16.msra.mxu0 %v47
  %61 = vmatpush.bf16.msra.mxu0 %v46
  %62 = vmatmul.bf16.gmra.mxu0 %v52
  %v63 = vpop.f32.mrf.mxu0
  %v64 = vadd.f32 %v36, %v63
  %v65 = vpop.f32.mrf.mxu0
  %v66 = vadd.f32 %v36, %v65
  %67 = vdwg.mxu0
  %v68 = vmul.f32 %v64, 0.5
  %v69 = vmul.f32 %v66, 0.5
  %v70 = vmul.f32 %v64, 0.70710677
  %v71 = vmul.f32 %v66, 0.70710677
  %v72 = vand.u32 2147483647, %v70
  %v73 = vand.u32 2147483647, %v71
  %v74 = vmul.f32 %v72, 0.3275911
  %v75 = vmul.f32 %v73, 0.3275911
  %v76 = vadd.f32 %v74, 1.0
  %v77 = vadd.f32 %v75, 1.0
  %v78 = vrcp.pop %v76
  %v79 = vmul.f32 %v76, %v78
  %v80 = vsub.f32 1.0, %v79
  %v81 = vmul.f32 %v78, %v80
  %v82 = vadd.f32 %v78, %v81
  %vm83 = vweird.f32 %v76
  %vm84 = vweird.f32 %v78
  %vm85 = vmor %vm83, %vm84
  %v86 = vsel %vm85, %v78, %v82
  %v87 = vand.u32 2147483647, %v76
  %vm88 = vcmp.eq.f32.partialorder %v87, 8.507059e+37
  %v89 = vand.u32 %v76, 2147483648
  %v90 = vor.u32 1.1754944e-38, %v89
  %v91 = vsel %vm88, %v90, %v86
  %v92 = vmul.f32 1.0, %v91
  %v93 = vrcp.pop %v77
  %v94 = vmul.f32 %v77, %v93
  %v95 = vsub.f32 1.0, %v94
  %v96 = vmul.f32 %v93, %v95
  %v97 = vadd.f32 %v93, %v96
  %vm98 = vweird.f32 %v77
  %vm99 = vweird.f32 %v93
  %vm100 = vmor %vm98, %vm99
  %v101 = vsel %vm100, %v93, %v97
  %v102 = vand.u32 2147483647, %v77
  %vm103 = vcmp.eq.f32.partialorder %v102, 8.507059e+37
  %v104 = vand.u32 %v77, 2147483648
  %v105 = vor.u32 1.1754944e-38, %v104
  %v106 = vsel %vm103, %v105, %v101
  %v107 = vmul.f32 1.0, %v106
  %v108 = vmul.f32 %v92, 1.0614054
  %v109 = vmul.f32 %v107, 1.0614054
  %v110 = vadd.f32 %v108, -1.4531521
  %v111 = vadd.f32 %v109, -1.4531521
  %v112 = vmul.f32 %v110, %v92
  %v113 = vmul.f32 %v111, %v107
  %v114 = vadd.f32 %v112, 1.4214138
  %v115 = vadd.f32 %v113, 1.4214138
  %v116 = vmul.f32 %v114, %v92
  %v117 = vmul.f32 %v115, %v107
  %v118 = vadd.f32 %v116, -0.28449672
  %v119 = vadd.f32 %v117, -0.28449672
  %v120 = vmul.f32 %v118, %v92
  %v121 = vmul.f32 %v119, %v107
  %v122 = vadd.f32 %v120, 0.2548296
  %v123 = vadd.f32 %v121, 0.2548296
  %v124 = vmul.f32 %v122, %v92
  %v125 = vmul.f32 %v123, %v107
  %v126 = vsub.f32 0.0, %v72
  %v127 = vsub.f32 0.0, %v73
  %v128 = vmul.f32 %v126, %v72
  %v129 = vmul.f32 %v127, %v73
  %v130 = vmul.f32 %v128, 1.442695
  %v131 = vpow.pop %v130
  %v132 = vmul.f32 %v129, 1.442695
  %v133 = vpow.pop %v132
  %v134 = vmul.f32 %v124, %v131
  %v135 = vmul.f32 %v125, %v133
  %v136 = vsub.f32 1.0, %v134
  %v137 = vsub.f32 1.0, %v135
  %vm138 = vcmp.ge.f32.partialorder %v70, 0.0
  %vm139 = vcmp.ge.f32.partialorder %v71, 0.0
  %v140 = vsub.f32 0.0, %v136
  %v141 = vsub.f32 0.0, %v137
  %v142 = vsel %vm138, %v136, %v140
  %v143 = vsel %vm139, %v137, %v141
  %v144 = vadd.f32 %v142, 1.0
  %v145 = vadd.f32 %v143, 1.0
  %v146 = vmul.f32 %v68, %v144
  %v147 = vmul.f32 %v69, %v145
  %v148 = vpack.c.bf16 %v147, %v146
  %v149 = vld [vmem:[%s3] sm:$0xf]
  %v150 = vld [vmem:[%s3 + $0x4] sm:$0xf]
  %v151 = vld [vmem:[%s3 + $0x8] sm:$0xf]
  %v152 = vld [vmem:[%s3 + $0xc] sm:$0xf]
  %v153 = vld [vmem:[%s3 + $0x10] sm:$0xf]
  %v154 = vld [vmem:[%s3 + $0x14] sm:$0xf]
  %v155 = vld [vmem:[%s3 + $0x18] sm:$0xf]
  %v156 = vld [vmem:[%s3 + $0x1c] sm:$0xf]
  %v157 = vld [vmem:[%s4] sm:$0x1]
  %v159 = vperm.slane %v157, 0
  %v169 = vunpack.c.l.b16 %v149
  %v170 = vunpack.c.l.b16 %v150
  %v171 = vunpack.c.l.b16 %v151
  %v172 = vunpack.c.l.b16 %v152
  %v173 = vunpack.c.l.b16 %v153
  %v174 = vunpack.c.l.b16 %v154
  %v175 = vunpack.c.l.b16 %v155
  %v176 = vunpack.c.l.b16 %v156
  %v177 = vpack.c.b16 %v170, %v169
  %v178 = vpack.c.b16 %v172, %v171
  %v179 = vpack.c.b16 %v174, %v173
  %v180 = vpack.c.b16 %v176, %v175
  %vm185 = vcmask 523264
  %v187 = vsel %vm185, %v148, 0
  %189 = vmatpush.bf16.msra.mxu0 0
  %190 = vmatpush.bf16.msra.mxu0 0
  %191 = vmatpush.bf16.msra.mxu0 0
  %192 = vmatpush.bf16.msra.mxu0 0
  %193 = vmatpush.bf16.msra.mxu0 %v180
  %194 = vmatpush.bf16.msra.mxu0 %v179
  %195 = vmatpush.bf16.msra.mxu0 %v178
  %196 = vmatpush.bf16.msra.mxu0 %v177
  %197 = vmatmul.bf16.gmra.mxu0 %v187
  %v198 = vpop.f32.mrf.mxu0
  %v199 = vadd.f32 %v159, %v198
  %v200 = vpop.f32.mrf.mxu0
  %v201 = vadd.f32 %v159, %v200
  %202 = vdwg.mxu0
  %v203 = vadd.f32 %v199, %v27
  %v204 = vadd.f32 %v201, %v28
  %v205 = vld [vmem:[%s5] sm:$0x1]
  %v206 = vld [vmem:[%s6] sm:$0x1]
  %v207 = vsel %vm50, %v203, 0.0
  %208 = vadd.xlane.f32.xlu0 %v207
  %v209 = vpop.xlane.xlu0 %208
  %v210 = vsel %vm50, %v204, 0.0
  %211 = vadd.xlane.f32.xlu0 %v210
  %v212 = vpop.xlane.xlu0 %211
  %v213 = vrcp.pop 32.0
  %v214 = vmul.f32 32.0, %v213
  %v215 = vsub.f32 1.0, %v214
  %v216 = vmul.f32 %v213, %v215
  %v217 = vadd.f32 %v213, %v216
  %vm218 = vweird.f32 %v213
  %v219 = vsel %vm218, %v213, %v217
  %v220 = vmul.f32 %v209, %v219
  %v221 = vmul.f32 %v212, %v219
  %v222 = vsub.f32 %v203, %v220
  %v223 = vsub.f32 %v204, %v221
  %v224 = vmul.f32 %v222, %v222
  %v225 = vmul.f32 %v223, %v223
  %v226 = vsel %vm50, %v224, 0.0
  %227 = vadd.xlane.f32.xlu0 %v226
  %v228 = vpop.xlane.xlu0 %227
  %v229 = vsel %vm50, %v225, 0.0
  %230 = vadd.xlane.f32.xlu0 %v229
  %v231 = vpop.xlane.xlu0 %230
  %v232 = vmul.f32 %v228, %v219
  %v233 = vmul.f32 %v231, %v219
  %v234 = vadd.f32 %v232, 1e-12
  %v235 = vadd.f32 %v233, 1e-12
  %v236 = vrsqrt.pop %v234
  %v237 = vmul.f32 %v236, %v234
  %v238 = vmul.f32 %v237, %v236
  %v239 = vmul.f32 0.5, %v238
  %v240 = vsub.f32 1.5, %v239
  %v241 = vmul.f32 %v236, %v240
  %vm242 = vweird.f32 %v234
  %vm243 = vweird.f32 %v236
  %vm244 = vmor %vm242, %vm243
  %v245 = vsel %vm244, %v236, %v241
  %v246 = vrsqrt.pop %v235
  %v247 = vmul.f32 %v246, %v235
  %v248 = vmul.f32 %v247, %v246
  %v249 = vmul.f32 0.5, %v248
  %v250 = vsub.f32 1.5, %v249
  %v251 = vmul.f32 %v246, %v250
  %vm252 = vweird.f32 %v235
  %vm253 = vweird.f32 %v246
  %vm254 = vmor %vm252, %vm253
  %v255 = vsel %vm254, %v246, %v251
  %v256 = vmul.f32 %v222, %v245
  %v257 = vmul.f32 %v223, %v255
  %v259 = vperm.slane %v205, 0
  %v261 = vmul.f32 %v256, %v259
  %v262 = vmul.f32 %v257, %v259
  %v264 = vperm.slane %v206, 0
  %v266 = vadd.f32 %v261, %v264
  %v267 = vadd.f32 %v262, %v264
  %268 = vst.msk [vmem:[%s7] sm:$0xff] %vm50, %v266
  %269 = vst.msk [vmem:[%s7 + $0x8] sm:$0xff] %vm50, %v267
  // Predicated region
  $region30: #{bert_forward.13} parent=0 // pred_check
    _
  $region31: #{bert_forward.13} parent=0 // pred_check_branch
    %271 = sbr.rel (0) target = $region33
  $region32: #{bert_forward.13} parent=0 // pred_region
    _
  $region33: #{bert_forward.13} parent=0 // pred_fallthru
    _
  // Predicated region
  $region34: #{bert_forward.13} parent=0 // pred_check
    _
  $region35: #{bert_forward.13} parent=0 // pred_check_branch
    %273 = sbr.rel (0) target = $region37
  $region36: #{bert_forward.13} parent=0 // pred_region
    _
  $region37: #{bert_forward.13} parent=0 // pred_fallthru
    _

</llo_original>
